<compile_context>
chip_gen: v6e
topology: v6e:2x2x1
jax: 0.10.0
libtpu: 0.0.40
codegen_flags: <defaults>
</compile_context>

<pallas_src>
import functools
import math

import jax
import jax.numpy as jnp
from jax.experimental import pallas as pl
from jax.experimental.pallas import tpu as pltpu


def _round_up(x, m):
    return (x + m - 1) // m * m


# ---------------------------------------------------------------------------
# Fused kernel: for one (ncb, H, W) channel-pack block, emit every pyramid
# level's pooled output.  All window bounds are Python ints (trace time), so
# every ref access below is a static slice.
#
#   levels: tuple of (kh, kw, sh, sw, ph, pw, lh, lw) per level, where
#     (kh, kw) pooling window, (sh, sw) stride,
#     (ph, pw) cumulative top/left zero padding carried into this level,
#     (lh, lw) number of output bins.
# ---------------------------------------------------------------------------
def _spp_kernel(x_ref, *o_refs, levels, h, w):
    ncb = x_ref.shape[0]
    for o_ref, (kh, kw, sh, sw, ph, pw, lh, lw) in zip(o_refs, levels):
        for r in range(lh):
            r0v = r * sh - ph                       # window start in padded coords
            r0, r1 = max(0, r0v), min(h, r0v + kh)  # clamp to real data
            for c in range(lw):
                c0v = c * sw - pw
                c0, c1 = max(0, c0v), min(w, c0v + kw)
                if r1 <= r0 or c1 <= c0:
                    # Window lies entirely inside the zero-padded border.
                    v = jnp.zeros((ncb, 1, 1), dtype=o_ref.dtype)
                else:
                    slab = x_ref[:, r0:r1, c0:c1]            # (ncb, rows, cols)
                    v = jnp.max(slab, axis=2, keepdims=True)  # lane reduce
                    v = jnp.max(v, axis=1, keepdims=True)     # sublane reduce
                    if r0v < 0 or c0v < 0:
                        # Window touches the virtual zero padding.
                        v = jnp.maximum(v, jnp.zeros((), dtype=v.dtype))
                    v = v.astype(o_ref.dtype)
                o_ref[:, r:r + 1, c:c + 1] = v


# ---------------------------------------------------------------------------
# Generation-aware VMEM budgeting / block selection.
# ---------------------------------------------------------------------------
def _vmem_capacity_bytes():
    try:
        cap = int(pltpu.get_tpu_info().vmem_capacity_bytes)
        if cap > 0:
            return cap
    except Exception:
        pass
    return 64 << 20  # conservative default (v7x per-TensorCore VMEM)


def _choose_ncb(nc, h, w, itemsize, budget):
    """Channels per block.  The leading block dim is unconstrained by the
    (8,128) tiling rule (that applies to the trailing H, W dims, which we take
    whole), so any divisor of NC is legal.  (The dtype sublane-granularity
    concern from the review applied to the old (P, L) channel packing; here the
    sublane/lane dims are always the full H, W.)  Pick the largest divisor
    whose padded VMEM footprint fits the budget, then prefer >= 2 grid blocks
    so both v7x TensorCores (and pipeline double-buffering) get used."""
    page = _round_up(h, 8) * _round_up(w, 128) * itemsize   # per-channel VMEM page
    divisors = [d for d in range(nc, 0, -1) if nc % d == 0]
    ncb = 1
    for d in divisors:
        if d * page <= budget:
            ncb = d
            break
    if ncb == nc and nc > 1:
        for d in divisors:
            if d < nc and d * page <= budget:
                ncb = d
                break
    return ncb


def _pooled_levels(xr, levels):
    """xr: (NC, H, W).  Returns one (NC, lh, lw) array per level, all computed
    in a single pallas_call (a single HBM pass over xr)."""
    nc, h, w = xr.shape
    itemsize = xr.dtype.itemsize

    cap = _vmem_capacity_bytes()
    vmem_limit = min(64 << 20, max(32 << 20, cap // 2))
    budget = vmem_limit // 3          # input is double-buffered; leave headroom
    ncb = _choose_ncb(nc, h, w, itemsize, budget)

    # Best-effort headroom if even a single channel page exceeds the budget
    # (huge H*W).  TODO(synk): add a spatial reduction grid axis (partial-max
    # VMEM accumulator + pl.when finalize) for maps too large for one block.
    page = _round_up(h, 8) * _round_up(w, 128) * itemsize
    vmem_limit = min(cap, max(vmem_limit, 2 * ncb * page + (8 << 20)))

    grid = (nc // ncb,)
    kernel = functools.partial(_spp_kernel, levels=tuple(levels), h=h, w=w)

    out_shape = tuple(jax.ShapeDtypeStruct((nc, lh, lw), xr.dtype)
                      for (_, _, _, _, _, _, lh, lw) in levels)
    out_specs = tuple(pl.BlockSpec((ncb, lh, lw), lambda i: (i, 0, 0))
                      for (_, _, _, _, _, _, lh, lw) in levels)
    in_specs = [pl.BlockSpec((ncb, h, w), lambda i: (i, 0, 0))]

    return pl.pallas_call(
        kernel,
        out_shape=out_shape,
        grid=grid,
        in_specs=in_specs,
        out_specs=out_specs,
        compiler_params=pltpu.CompilerParams(
            dimension_semantics=("parallel",),
            vmem_limit_bytes=vmem_limit),
    )(xr)


# ---------------------------------------------------------------------------
# Module mirrors.
# ---------------------------------------------------------------------------
class Maxpool:
    """nn.MaxPool2d(kernel_size=size, stride=stride) (floor mode, no padding),
    via the same fused kernel.  Overlapping windows (stride < kernel) are
    supported since every bin reads its own window from the VMEM ref."""

    def __init__(self, size, stride):
        self.size = (size, size) if isinstance(size, int) else tuple(size)
        self.stride = (stride, stride) if isinstance(stride, int) else tuple(stride)

    def __call__(self, x):                      # x: (N, C, H, W)
        n, c, h, w = x.shape
        kh, kw = self.size
        sh, sw = self.stride
        lh = (h - kh) // sh + 1
        lw = (w - kw) // sw + 1
        (out,) = _pooled_levels(x.reshape(n * c, h, w),
                                [(kh, kw, sh, sw, 0, 0, lh, lw)])
        return out.reshape(n, c, lh, lw)


class SPP:
    """Pallas/JAX port of the PyTorch SPP module: NCHW in, (N, sum C*l*l) out.
    All pyramid levels share ONE pallas_call / one HBM pass of the input."""

    def __init__(self, size):
        self.size = tuple(size)

    def __call__(self, x):                      # x: (N, C, H, W)
        n, c, h, w = x.shape
        levels = []
        ph = pw = 0
        for layer in self.size:
            kh = math.ceil(h / layer)           # kernel == stride, from ORIGINAL H/W
            kw = math.ceil(w / layer)
            ph += kh * layer - h                # ZeroPad2d((pad_w,0,pad_h,0)) carried
            pw += kw * layer - w                #   across levels, like the reference
            lh = (h + ph) // kh                 # MaxPool2d floor mode
            lw = (w + pw) // kw
            levels.append((kh, kw, kh, kw, ph, pw, lh, lw))

        pooled = _pooled_levels(x.reshape(n * c, h, w), levels)
        # (NC, lh, lw) -> (N, C*lh*lw): pure row-major merges (no transpose),
        # matching torch's Flatten(1, 3) ordering; concat matches torch.cat.
        feats = [p.reshape(n, c * p.shape[1] * p.shape[2]) for p in pooled]
        return jnp.concatenate(feats, axis=-1)


# ---------------------------------------------------------------------------
# Pure-JAX reference (mirrors the PyTorch forward 1:1) for correctness checks.
# ---------------------------------------------------------------------------
def _spp_reference(x, sizes):
    n, _, h0, w0 = x.shape
    xr = x
    feats = []
    for layer in sizes:
        h_win = math.ceil(h0 / layer)
        w_win = math.ceil(w0 / layer)
        pad_h = h_win * layer - h0
        pad_w = w_win * layer - w0
        xr = jnp.pad(xr, ((0, 0), (0, 0), (pad_h, 0), (pad_w, 0)))
        pooled = jax.lax.reduce_window(
            xr, -jnp.inf, jax.lax.max,
            window_dimensions=(1, 1, h_win, w_win),
            window_strides=(1, 1, h_win, w_win),
            padding="VALID")
        feats.append(pooled.reshape(n, -1))
    return jnp.concatenate(feats, axis=-1)


if __name__ == "__main__":
    key = jax.random.PRNGKey(0)
    x = jax.random.normal(key, (2, 4, 16, 16), dtype=jnp.float32)

    # Config 1: classic divisible pyramid (1x1, 2x2, 4x4 bins) -> (2, 84).
    spp = SPP(size=(1, 2, 4))
    y = jax.block_until_ready(spp(x))
    ref = _spp_reference(x, (1, 2, 4))
    assert y.shape == ref.shape == (2, 4 * (1 + 4 + 16)), (y.shape, ref.shape)
    assert jnp.allclose(y, ref), "SPP (1,2,4) mismatch"

    # Config 2: non-divisible first level -> exercises the virtual zero padding
    # carried across levels and the floor (dropped trailing rows/cols) path.
    spp2 = SPP(size=(3, 2))
    y2 = jax.block_until_ready(spp2(x))
    ref2 = _spp_reference(x, (3, 2))
    assert y2.shape == ref2.shape, (y2.shape, ref2.shape)
    assert jnp.allclose(y2, ref2), "SPP (3,2) mismatch"

    # Standalone Maxpool with overlapping windows (kernel 3, stride 2).
    mp = Maxpool(size=3, stride=2)
    y3 = jax.block_until_ready(mp(x))
    ref3 = jax.lax.reduce_window(
        x, -jnp.inf, jax.lax.max,
        window_dimensions=(1, 1, 3, 3), window_strides=(1, 1, 2, 2),
        padding="VALID")
    assert y3.shape == ref3.shape, (y3.shape, ref3.shape)
    assert jnp.allclose(y3, ref3), "Maxpool 3/2 mismatch"

    print("KERNEL_OK")
</pallas_src>

<mosaic_0001>
module attributes {stable_mosaic.version = 11 : i64} {
  func.func @_spp_kernel(%arg0: i32, %arg1: memref<4x16x16xf32, #tpu.memory_space<vmem>>, %arg2: memref<4x1x1xf32, #tpu.memory_space<vmem>>, %arg3: memref<4x2x2xf32, #tpu.memory_space<vmem>>, %arg4: memref<4x4x4xf32, #tpu.memory_space<vmem>>) attributes {dimension_semantics = [#tpu.dimension_semantics<parallel>], iteration_bounds = array<i64: 2>, scalar_prefetch = 0 : i64, scratch_operands = 0 : i64, tpu.core_type = #tpu.core_type<tc>, window_params = [{transform_indices = @transform_0, window_bounds = array<i64: 4, 16, 16>}, {transform_indices = @transform_1, window_bounds = array<i64: 4, 1, 1>}, {transform_indices = @transform_2, window_bounds = array<i64: 4, 2, 2>}, {transform_indices = @transform_3, window_bounds = array<i64: 4, 4, 4>}]} {
    %c0 = arith.constant 0 : index
    %c0_0 = arith.constant 0 : index
    %c0_1 = arith.constant 0 : index
    %0 = vector.load %arg1[%c0, %c0_0, %c0_1] : memref<4x16x16xf32, #tpu.memory_space<vmem>>, vector<4x16x16xf32>
    %cst = arith.constant dense<0xFF800000> : vector<4x16xf32>
    %1 = vector.multi_reduction <maximumf>, %0, %cst [2] : vector<4x16x16xf32> to vector<4x16xf32>
    %2 = vector.shape_cast %1 : vector<4x16xf32> to vector<4x16x1xf32>
    %cst_2 = arith.constant dense<0xFF800000> : vector<4x1xf32>
    %3 = vector.multi_reduction <maximumf>, %2, %cst_2 [1] : vector<4x16x1xf32> to vector<4x1xf32>
    %4 = vector.shape_cast %3 : vector<4x1xf32> to vector<4x1x1xf32>
    %c0_3 = arith.constant 0 : index
    %c0_4 = arith.constant 0 : index
    %c0_5 = arith.constant 0 : index
    %5 = vector.load %arg2[%c0_3, %c0_4, %c0_5] : memref<4x1x1xf32, #tpu.memory_space<vmem>>, vector<4x1x1xf32>
    tpu.vector_store %arg2[%c0_3, %c0_4, %c0_5], %4 {strides = array<i32>} : memref<4x1x1xf32, #tpu.memory_space<vmem>>, vector<4x1x1xf32>,
    %c0_6 = arith.constant 0 : index
    %c0_7 = arith.constant 0 : index
    %c0_8 = arith.constant 0 : index
    %6 = vector.load %arg1[%c0_6, %c0_7, %c0_8] : memref<4x16x16xf32, #tpu.memory_space<vmem>>, vector<4x8x8xf32>
    %cst_9 = arith.constant dense<0xFF800000> : vector<4x8xf32>
    %7 = vector.multi_reduction <maximumf>, %6, %cst_9 [2] : vector<4x8x8xf32> to vector<4x8xf32>
    %8 = vector.shape_cast %7 : vector<4x8xf32> to vector<4x8x1xf32>
    %cst_10 = arith.constant dense<0xFF800000> : vector<4x1xf32>
    %9 = vector.multi_reduction <maximumf>, %8, %cst_10 [1] : vector<4x8x1xf32> to vector<4x1xf32>
    %10 = vector.shape_cast %9 : vector<4x1xf32> to vector<4x1x1xf32>
    %c0_11 = arith.constant 0 : index
    %c0_12 = arith.constant 0 : index
    %c0_13 = arith.constant 0 : index
    %11 = vector.load %arg3[%c0_11, %c0_12, %c0_13] : memref<4x2x2xf32, #tpu.memory_space<vmem>>, vector<4x1x1xf32>
    tpu.vector_store %arg3[%c0_11, %c0_12, %c0_13], %10 {strides = array<i32>} : memref<4x2x2xf32, #tpu.memory_space<vmem>>, vector<4x1x1xf32>,
    %c0_14 = arith.constant 0 : index
    %c0_15 = arith.constant 0 : index
    %c8 = arith.constant 8 : index
    %12 = vector.load %arg1[%c0_14, %c0_15, %c8] : memref<4x16x16xf32, #tpu.memory_space<vmem>>, vector<4x8x8xf32>
    %cst_16 = arith.constant dense<0xFF800000> : vector<4x8xf32>
    %13 = vector.multi_reduction <maximumf>, %12, %cst_16 [2] : vector<4x8x8xf32> to vector<4x8xf32>
    %14 = vector.shape_cast %13 : vector<4x8xf32> to vector<4x8x1xf32>
    %cst_17 = arith.constant dense<0xFF800000> : vector<4x1xf32>
    %15 = vector.multi_reduction <maximumf>, %14, %cst_17 [1] : vector<4x8x1xf32> to vector<4x1xf32>
    %16 = vector.shape_cast %15 : vector<4x1xf32> to vector<4x1x1xf32>
    %c0_18 = arith.constant 0 : index
    %c0_19 = arith.constant 0 : index
    %c1 = arith.constant 1 : index
    %17 = vector.load %arg3[%c0_18, %c0_19, %c1] : memref<4x2x2xf32, #tpu.memory_space<vmem>>, vector<4x1x1xf32>
    tpu.vector_store %arg3[%c0_18, %c0_19, %c1], %16 {strides = array<i32>} : memref<4x2x2xf32, #tpu.memory_space<vmem>>, vector<4x1x1xf32>,
    %c0_20 = arith.constant 0 : index
    %c8_21 = arith.constant 8 : index
    %c0_22 = arith.constant 0 : index
    %18 = vector.load %arg1[%c0_20, %c8_21, %c0_22] : memref<4x16x16xf32, #tpu.memory_space<vmem>>, vector<4x8x8xf32>
    %cst_23 = arith.constant dense<0xFF800000> : vector<4x8xf32>
    %19 = vector.multi_reduction <maximumf>, %18, %cst_23 [2] : vector<4x8x8xf32> to vector<4x8xf32>
    %20 = vector.shape_cast %19 : vector<4x8xf32> to vector<4x8x1xf32>
    %cst_24 = arith.constant dense<0xFF800000> : vector<4x1xf32>
    %21 = vector.multi_reduction <maximumf>, %20, %cst_24 [1] : vector<4x8x1xf32> to vector<4x1xf32>
    %22 = vector.shape_cast %21 : vector<4x1xf32> to vector<4x1x1xf32>
    %c0_25 = arith.constant 0 : index
    %c1_26 = arith.constant 1 : index
    %c0_27 = arith.constant 0 : index
    %23 = vector.load %arg3[%c0_25, %c1_26, %c0_27] : memref<4x2x2xf32, #tpu.memory_space<vmem>>, vector<4x1x1xf32>
    tpu.vector_store %arg3[%c0_25, %c1_26, %c0_27], %22 {strides = array<i32>} : memref<4x2x2xf32, #tpu.memory_space<vmem>>, vector<4x1x1xf32>,
    %c0_28 = arith.constant 0 : index
    %c8_29 = arith.constant 8 : index
    %c8_30 = arith.constant 8 : index
    %24 = vector.load %arg1[%c0_28, %c8_29, %c8_30] : memref<4x16x16xf32, #tpu.memory_space<vmem>>, vector<4x8x8xf32>
    %cst_31 = arith.constant dense<0xFF800000> : vector<4x8xf32>
    %25 = vector.multi_reduction <maximumf>, %24, %cst_31 [2] : vector<4x8x8xf32> to vector<4x8xf32>
    %26 = vector.shape_cast %25 : vector<4x8xf32> to vector<4x8x1xf32>
    %cst_32 = arith.constant dense<0xFF800000> : vector<4x1xf32>
    %27 = vector.multi_reduction <maximumf>, %26, %cst_32 [1] : vector<4x8x1xf32> to vector<4x1xf32>
    %28 = vector.shape_cast %27 : vector<4x1xf32> to vector<4x1x1xf32>
    %c0_33 = arith.constant 0 : index
    %c1_34 = arith.constant 1 : index
    %c1_35 = arith.constant 1 : index
    %29 = vector.load %arg3[%c0_33, %c1_34, %c1_35] : memref<4x2x2xf32, #tpu.memory_space<vmem>>, vector<4x1x1xf32>
    tpu.vector_store %arg3[%c0_33, %c1_34, %c1_35], %28 {strides = array<i32>} : memref<4x2x2xf32, #tpu.memory_space<vmem>>, vector<4x1x1xf32>,
    %c0_36 = arith.constant 0 : index
    %c0_37 = arith.constant 0 : index
    %c0_38 = arith.constant 0 : index
    %30 = vector.load %arg1[%c0_36, %c0_37, %c0_38] : memref<4x16x16xf32, #tpu.memory_space<vmem>>, vector<4x4x4xf32>
    %cst_39 = arith.constant dense<0xFF800000> : vector<4x4xf32>
    %31 = vector.multi_reduction <maximumf>, %30, %cst_39 [2] : vector<4x4x4xf32> to vector<4x4xf32>
    %32 = vector.shape_cast %31 : vector<4x4xf32> to vector<4x4x1xf32>
    %cst_40 = arith.constant dense<0xFF800000> : vector<4x1xf32>
    %33 = vector.multi_reduction <maximumf>, %32, %cst_40 [1] : vector<4x4x1xf32> to vector<4x1xf32>
    %34 = vector.shape_cast %33 : vector<4x1xf32> to vector<4x1x1xf32>
    %c0_41 = arith.constant 0 : index
    %c0_42 = arith.constant 0 : index
    %c0_43 = arith.constant 0 : index
    %35 = vector.load %arg4[%c0_41, %c0_42, %c0_43] : memref<4x4x4xf32, #tpu.memory_space<vmem>>, vector<4x1x1xf32>
    tpu.vector_store %arg4[%c0_41, %c0_42, %c0_43], %34 {strides = array<i32>} : memref<4x4x4xf32, #tpu.memory_space<vmem>>, vector<4x1x1xf32>,
    %c0_44 = arith.constant 0 : index
    %c0_45 = arith.constant 0 : index
    %c4 = arith.constant 4 : index
    %36 = vector.load %arg1[%c0_44, %c0_45, %c4] : memref<4x16x16xf32, #tpu.memory_space<vmem>>, vector<4x4x4xf32>
    %cst_46 = arith.constant dense<0xFF800000> : vector<4x4xf32>
    %37 = vector.multi_reduction <maximumf>, %36, %cst_46 [2] : vector<4x4x4xf32> to vector<4x4xf32>
    %38 = vector.shape_cast %37 : vector<4x4xf32> to vector<4x4x1xf32>
    %cst_47 = arith.constant dense<0xFF800000> : vector<4x1xf32>
    %39 = vector.multi_reduction <maximumf>, %38, %cst_47 [1] : vector<4x4x1xf32> to vector<4x1xf32>
    %40 = vector.shape_cast %39 : vector<4x1xf32> to vector<4x1x1xf32>
    %c0_48 = arith.constant 0 : index
    %c0_49 = arith.constant 0 : index
    %c1_50 = arith.constant 1 : index
    %41 = vector.load %arg4[%c0_48, %c0_49, %c1_50] : memref<4x4x4xf32, #tpu.memory_space<vmem>>, vector<4x1x1xf32>
    tpu.vector_store %arg4[%c0_48, %c0_49, %c1_50], %40 {strides = array<i32>} : memref<4x4x4xf32, #tpu.memory_space<vmem>>, vector<4x1x1xf32>,
    %c0_51 = arith.constant 0 : index
    %c0_52 = arith.constant 0 : index
    %c8_53 = arith.constant 8 : index
    %42 = vector.load %arg1[%c0_51, %c0_52, %c8_53] : memref<4x16x16xf32, #tpu.memory_space<vmem>>, vector<4x4x4xf32>
    %cst_54 = arith.constant dense<0xFF800000> : vector<4x4xf32>
    %43 = vector.multi_reduction <maximumf>, %42, %cst_54 [2] : vector<4x4x4xf32> to vector<4x4xf32>
    %44 = vector.shape_cast %43 : vector<4x4xf32> to vector<4x4x1xf32>
    %cst_55 = arith.constant dense<0xFF800000> : vector<4x1xf32>
    %45 = vector.multi_reduction <maximumf>, %44, %cst_55 [1] : vector<4x4x1xf32> to vector<4x1xf32>
    %46 = vector.shape_cast %45 : vector<4x1xf32> to vector<4x1x1xf32>
    %c0_56 = arith.constant 0 : index
    %c0_57 = arith.constant 0 : index
    %c2 = arith.constant 2 : index
    %47 = vector.load %arg4[%c0_56, %c0_57, %c2] : memref<4x4x4xf32, #tpu.memory_space<vmem>>, vector<4x1x1xf32>
    tpu.vector_store %arg4[%c0_56, %c0_57, %c2], %46 {strides = array<i32>} : memref<4x4x4xf32, #tpu.memory_space<vmem>>, vector<4x1x1xf32>,
    %c0_58 = arith.constant 0 : index
    %c0_59 = arith.constant 0 : index
    %c12 = arith.constant 12 : index
    %48 = vector.load %arg1[%c0_58, %c0_59, %c12] : memref<4x16x16xf32, #tpu.memory_space<vmem>>, vector<4x4x4xf32>
    %cst_60 = arith.constant dense<0xFF800000> : vector<4x4xf32>
    %49 = vector.multi_reduction <maximumf>, %48, %cst_60 [2] : vector<4x4x4xf32> to vector<4x4xf32>
    %50 = vector.shape_cast %49 : vector<4x4xf32> to vector<4x4x1xf32>
    %cst_61 = arith.constant dense<0xFF800000> : vector<4x1xf32>
    %51 = vector.multi_reduction <maximumf>, %50, %cst_61 [1] : vector<4x4x1xf32> to vector<4x1xf32>
    %52 = vector.shape_cast %51 : vector<4x1xf32> to vector<4x1x1xf32>
    %c0_62 = arith.constant 0 : index
    %c0_63 = arith.constant 0 : index
    %c3 = arith.constant 3 : index
    %53 = vector.load %arg4[%c0_62, %c0_63, %c3] : memref<4x4x4xf32, #tpu.memory_space<vmem>>, vector<4x1x1xf32>
    tpu.vector_store %arg4[%c0_62, %c0_63, %c3], %52 {strides = array<i32>} : memref<4x4x4xf32, #tpu.memory_space<vmem>>, vector<4x1x1xf32>,
    %c0_64 = arith.constant 0 : index
    %c4_65 = arith.constant 4 : index
    %c0_66 = arith.constant 0 : index
    %54 = vector.load %arg1[%c0_64, %c4_65, %c0_66] : memref<4x16x16xf32, #tpu.memory_space<vmem>>, vector<4x4x4xf32>
    %cst_67 = arith.constant dense<0xFF800000> : vector<4x4xf32>
    %55 = vector.multi_reduction <maximumf>, %54, %cst_67 [2] : vector<4x4x4xf32> to vector<4x4xf32>
    %56 = vector.shape_cast %55 : vector<4x4xf32> to vector<4x4x1xf32>
    %cst_68 = arith.constant dense<0xFF800000> : vector<4x1xf32>
    %57 = vector.multi_reduction <maximumf>, %56, %cst_68 [1] : vector<4x4x1xf32> to vector<4x1xf32>
    %58 = vector.shape_cast %57 : vector<4x1xf32> to vector<4x1x1xf32>
    %c0_69 = arith.constant 0 : index
    %c1_70 = arith.constant 1 : index
    %c0_71 = arith.constant 0 : index
    %59 = vector.load %arg4[%c0_69, %c1_70, %c0_71] : memref<4x4x4xf32, #tpu.memory_space<vmem>>, vector<4x1x1xf32>
    tpu.vector_store %arg4[%c0_69, %c1_70, %c0_71], %58 {strides = array<i32>} : memref<4x4x4xf32, #tpu.memory_space<vmem>>, vector<4x1x1xf32>,
    %c0_72 = arith.constant 0 : index
    %c4_73 = arith.constant 4 : index
    %c4_74 = arith.constant 4 : index
    %60 = vector.load %arg1[%c0_72, %c4_73, %c4_74] : memref<4x16x16xf32, #tpu.memory_space<vmem>>, vector<4x4x4xf32>
    %cst_75 = arith.constant dense<0xFF800000> : vector<4x4xf32>
    %61 = vector.multi_reduction <maximumf>, %60, %cst_75 [2] : vector<4x4x4xf32> to vector<4x4xf32>
    %62 = vector.shape_cast %61 : vector<4x4xf32> to vector<4x4x1xf32>
    %cst_76 = arith.constant dense<0xFF800000> : vector<4x1xf32>
    %63 = vector.multi_reduction <maximumf>, %62, %cst_76 [1] : vector<4x4x1xf32> to vector<4x1xf32>
    %64 = vector.shape_cast %63 : vector<4x1xf32> to vector<4x1x1xf32>
    %c0_77 = arith.constant 0 : index
    %c1_78 = arith.constant 1 : index
    %c1_79 = arith.constant 1 : index
    %65 = vector.load %arg4[%c0_77, %c1_78, %c1_79] : memref<4x4x4xf32, #tpu.memory_space<vmem>>, vector<4x1x1xf32>
    tpu.vector_store %arg4[%c0_77, %c1_78, %c1_79], %64 {strides = array<i32>} : memref<4x4x4xf32, #tpu.memory_space<vmem>>, vector<4x1x1xf32>,
    %c0_80 = arith.constant 0 : index
    %c4_81 = arith.constant 4 : index
    %c8_82 = arith.constant 8 : index
    %66 = vector.load %arg1[%c0_80, %c4_81, %c8_82] : memref<4x16x16xf32, #tpu.memory_space<vmem>>, vector<4x4x4xf32>
    %cst_83 = arith.constant dense<0xFF800000> : vector<4x4xf32>
    %67 = vector.multi_reduction <maximumf>, %66, %cst_83 [2] : vector<4x4x4xf32> to vector<4x4xf32>
    %68 = vector.shape_cast %67 : vector<4x4xf32> to vector<4x4x1xf32>
    %cst_84 = arith.constant dense<0xFF800000> : vector<4x1xf32>
    %69 = vector.multi_reduction <maximumf>, %68, %cst_84 [1] : vector<4x4x1xf32> to vector<4x1xf32>
    %70 = vector.shape_cast %69 : vector<4x1xf32> to vector<4x1x1xf32>
    %c0_85 = arith.constant 0 : index
    %c1_86 = arith.constant 1 : index
    %c2_87 = arith.constant 2 : index
    %71 = vector.load %arg4[%c0_85, %c1_86, %c2_87] : memref<4x4x4xf32, #tpu.memory_space<vmem>>, vector<4x1x1xf32>
    tpu.vector_store %arg4[%c0_85, %c1_86, %c2_87], %70 {strides = array<i32>} : memref<4x4x4xf32, #tpu.memory_space<vmem>>, vector<4x1x1xf32>,
    %c0_88 = arith.constant 0 : index
    %c4_89 = arith.constant 4 : index
    %c12_90 = arith.constant 12 : index
    %72 = vector.load %arg1[%c0_88, %c4_89, %c12_90] : memref<4x16x16xf32, #tpu.memory_space<vmem>>, vector<4x4x4xf32>
    %cst_91 = arith.constant dense<0xFF800000> : vector<4x4xf32>
    %73 = vector.multi_reduction <maximumf>, %72, %cst_91 [2] : vector<4x4x4xf32> to vector<4x4xf32>
    %74 = vector.shape_cast %73 : vector<4x4xf32> to vector<4x4x1xf32>
    %cst_92 = arith.constant dense<0xFF800000> : vector<4x1xf32>
    %75 = vector.multi_reduction <maximumf>, %74, %cst_92 [1] : vector<4x4x1xf32> to vector<4x1xf32>
    %76 = vector.shape_cast %75 : vector<4x1xf32> to vector<4x1x1xf32>
    %c0_93 = arith.constant 0 : index
    %c1_94 = arith.constant 1 : index
    %c3_95 = arith.constant 3 : index
    %77 = vector.load %arg4[%c0_93, %c1_94, %c3_95] : memref<4x4x4xf32, #tpu.memory_space<vmem>>, vector<4x1x1xf32>
    tpu.vector_store %arg4[%c0_93, %c1_94, %c3_95], %76 {strides = array<i32>} : memref<4x4x4xf32, #tpu.memory_space<vmem>>, vector<4x1x1xf32>,
    %c0_96 = arith.constant 0 : index
    %c8_97 = arith.constant 8 : index
    %c0_98 = arith.constant 0 : index
    %78 = vector.load %arg1[%c0_96, %c8_97, %c0_98] : memref<4x16x16xf32, #tpu.memory_space<vmem>>, vector<4x4x4xf32>
    %cst_99 = arith.constant dense<0xFF800000> : vector<4x4xf32>
    %79 = vector.multi_reduction <maximumf>, %78, %cst_99 [2] : vector<4x4x4xf32> to vector<4x4xf32>
    %80 = vector.shape_cast %79 : vector<4x4xf32> to vector<4x4x1xf32>
    %cst_100 = arith.constant dense<0xFF800000> : vector<4x1xf32>
    %81 = vector.multi_reduction <maximumf>, %80, %cst_100 [1] : vector<4x4x1xf32> to vector<4x1xf32>
    %82 = vector.shape_cast %81 : vector<4x1xf32> to vector<4x1x1xf32>
    %c0_101 = arith.constant 0 : index
    %c2_102 = arith.constant 2 : index
    %c0_103 = arith.constant 0 : index
    %83 = vector.load %arg4[%c0_101, %c2_102, %c0_103] : memref<4x4x4xf32, #tpu.memory_space<vmem>>, vector<4x1x1xf32>
    tpu.vector_store %arg4[%c0_101, %c2_102, %c0_103], %82 {strides = array<i32>} : memref<4x4x4xf32, #tpu.memory_space<vmem>>, vector<4x1x1xf32>,
    %c0_104 = arith.constant 0 : index
    %c8_105 = arith.constant 8 : index
    %c4_106 = arith.constant 4 : index
    %84 = vector.load %arg1[%c0_104, %c8_105, %c4_106] : memref<4x16x16xf32, #tpu.memory_space<vmem>>, vector<4x4x4xf32>
    %cst_107 = arith.constant dense<0xFF800000> : vector<4x4xf32>
    %85 = vector.multi_reduction <maximumf>, %84, %cst_107 [2] : vector<4x4x4xf32> to vector<4x4xf32>
    %86 = vector.shape_cast %85 : vector<4x4xf32> to vector<4x4x1xf32>
    %cst_108 = arith.constant dense<0xFF800000> : vector<4x1xf32>
    %87 = vector.multi_reduction <maximumf>, %86, %cst_108 [1] : vector<4x4x1xf32> to vector<4x1xf32>
    %88 = vector.shape_cast %87 : vector<4x1xf32> to vector<4x1x1xf32>
    %c0_109 = arith.constant 0 : index
    %c2_110 = arith.constant 2 : index
    %c1_111 = arith.constant 1 : index
    %89 = vector.load %arg4[%c0_109, %c2_110, %c1_111] : memref<4x4x4xf32, #tpu.memory_space<vmem>>, vector<4x1x1xf32>
    tpu.vector_store %arg4[%c0_109, %c2_110, %c1_111], %88 {strides = array<i32>} : memref<4x4x4xf32, #tpu.memory_space<vmem>>, vector<4x1x1xf32>,
    %c0_112 = arith.constant 0 : index
    %c8_113 = arith.constant 8 : index
    %c8_114 = arith.constant 8 : index
    %90 = vector.load %arg1[%c0_112, %c8_113, %c8_114] : memref<4x16x16xf32, #tpu.memory_space<vmem>>, vector<4x4x4xf32>
    %cst_115 = arith.constant dense<0xFF800000> : vector<4x4xf32>
    %91 = vector.multi_reduction <maximumf>, %90, %cst_115 [2] : vector<4x4x4xf32> to vector<4x4xf32>
    %92 = vector.shape_cast %91 : vector<4x4xf32> to vector<4x4x1xf32>
    %cst_116 = arith.constant dense<0xFF800000> : vector<4x1xf32>
    %93 = vector.multi_reduction <maximumf>, %92, %cst_116 [1] : vector<4x4x1xf32> to vector<4x1xf32>
    %94 = vector.shape_cast %93 : vector<4x1xf32> to vector<4x1x1xf32>
    %c0_117 = arith.constant 0 : index
    %c2_118 = arith.constant 2 : index
    %c2_119 = arith.constant 2 : index
    %95 = vector.load %arg4[%c0_117, %c2_118, %c2_119] : memref<4x4x4xf32, #tpu.memory_space<vmem>>, vector<4x1x1xf32>
    tpu.vector_store %arg4[%c0_117, %c2_118, %c2_119], %94 {strides = array<i32>} : memref<4x4x4xf32, #tpu.memory_space<vmem>>, vector<4x1x1xf32>,
    %c0_120 = arith.constant 0 : index
    %c8_121 = arith.constant 8 : index
    %c12_122 = arith.constant 12 : index
    %96 = vector.load %arg1[%c0_120, %c8_121, %c12_122] : memref<4x16x16xf32, #tpu.memory_space<vmem>>, vector<4x4x4xf32>
    %cst_123 = arith.constant dense<0xFF800000> : vector<4x4xf32>
    %97 = vector.multi_reduction <maximumf>, %96, %cst_123 [2] : vector<4x4x4xf32> to vector<4x4xf32>
    %98 = vector.shape_cast %97 : vector<4x4xf32> to vector<4x4x1xf32>
    %cst_124 = arith.constant dense<0xFF800000> : vector<4x1xf32>
    %99 = vector.multi_reduction <maximumf>, %98, %cst_124 [1] : vector<4x4x1xf32> to vector<4x1xf32>
    %100 = vector.shape_cast %99 : vector<4x1xf32> to vector<4x1x1xf32>
    %c0_125 = arith.constant 0 : index
    %c2_126 = arith.constant 2 : index
    %c3_127 = arith.constant 3 : index
    %101 = vector.load %arg4[%c0_125, %c2_126, %c3_127] : memref<4x4x4xf32, #tpu.memory_space<vmem>>, vector<4x1x1xf32>
    tpu.vector_store %arg4[%c0_125, %c2_126, %c3_127], %100 {strides = array<i32>} : memref<4x4x4xf32, #tpu.memory_space<vmem>>, vector<4x1x1xf32>,
    %c0_128 = arith.constant 0 : index
    %c12_129 = arith.constant 12 : index
    %c0_130 = arith.constant 0 : index
    %102 = vector.load %arg1[%c0_128, %c12_129, %c0_130] : memref<4x16x16xf32, #tpu.memory_space<vmem>>, vector<4x4x4xf32>
    %cst_131 = arith.constant dense<0xFF800000> : vector<4x4xf32>
    %103 = vector.multi_reduction <maximumf>, %102, %cst_131 [2] : vector<4x4x4xf32> to vector<4x4xf32>
    %104 = vector.shape_cast %103 : vector<4x4xf32> to vector<4x4x1xf32>
    %cst_132 = arith.constant dense<0xFF800000> : vector<4x1xf32>
    %105 = vector.multi_reduction <maximumf>, %104, %cst_132 [1] : vector<4x4x1xf32> to vector<4x1xf32>
    %106 = vector.shape_cast %105 : vector<4x1xf32> to vector<4x1x1xf32>
    %c0_133 = arith.constant 0 : index
    %c3_134 = arith.constant 3 : index
    %c0_135 = arith.constant 0 : index
    %107 = vector.load %arg4[%c0_133, %c3_134, %c0_135] : memref<4x4x4xf32, #tpu.memory_space<vmem>>, vector<4x1x1xf32>
    tpu.vector_store %arg4[%c0_133, %c3_134, %c0_135], %106 {strides = array<i32>} : memref<4x4x4xf32, #tpu.memory_space<vmem>>, vector<4x1x1xf32>,
    %c0_136 = arith.constant 0 : index
    %c12_137 = arith.constant 12 : index
    %c4_138 = arith.constant 4 : index
    %108 = vector.load %arg1[%c0_136, %c12_137, %c4_138] : memref<4x16x16xf32, #tpu.memory_space<vmem>>, vector<4x4x4xf32>
    %cst_139 = arith.constant dense<0xFF800000> : vector<4x4xf32>
    %109 = vector.multi_reduction <maximumf>, %108, %cst_139 [2] : vector<4x4x4xf32> to vector<4x4xf32>
    %110 = vector.shape_cast %109 : vector<4x4xf32> to vector<4x4x1xf32>
    %cst_140 = arith.constant dense<0xFF800000> : vector<4x1xf32>
    %111 = vector.multi_reduction <maximumf>, %110, %cst_140 [1] : vector<4x4x1xf32> to vector<4x1xf32>
    %112 = vector.shape_cast %111 : vector<4x1xf32> to vector<4x1x1xf32>
    %c0_141 = arith.constant 0 : index
    %c3_142 = arith.constant 3 : index
    %c1_143 = arith.constant 1 : index
    %113 = vector.load %arg4[%c0_141, %c3_142, %c1_143] : memref<4x4x4xf32, #tpu.memory_space<vmem>>, vector<4x1x1xf32>
    tpu.vector_store %arg4[%c0_141, %c3_142, %c1_143], %112 {strides = array<i32>} : memref<4x4x4xf32, #tpu.memory_space<vmem>>, vector<4x1x1xf32>,
    %c0_144 = arith.constant 0 : index
    %c12_145 = arith.constant 12 : index
    %c8_146 = arith.constant 8 : index
    %114 = vector.load %arg1[%c0_144, %c12_145, %c8_146] : memref<4x16x16xf32, #tpu.memory_space<vmem>>, vector<4x4x4xf32>
    %cst_147 = arith.constant dense<0xFF800000> : vector<4x4xf32>
    %115 = vector.multi_reduction <maximumf>, %114, %cst_147 [2] : vector<4x4x4xf32> to vector<4x4xf32>
    %116 = vector.shape_cast %115 : vector<4x4xf32> to vector<4x4x1xf32>
    %cst_148 = arith.constant dense<0xFF800000> : vector<4x1xf32>
    %117 = vector.multi_reduction <maximumf>, %116, %cst_148 [1] : vector<4x4x1xf32> to vector<4x1xf32>
    %118 = vector.shape_cast %117 : vector<4x1xf32> to vector<4x1x1xf32>
    %c0_149 = arith.constant 0 : index
    %c3_150 = arith.constant 3 : index
    %c2_151 = arith.constant 2 : index
    %119 = vector.load %arg4[%c0_149, %c3_150, %c2_151] : memref<4x4x4xf32, #tpu.memory_space<vmem>>, vector<4x1x1xf32>
    tpu.vector_store %arg4[%c0_149, %c3_150, %c2_151], %118 {strides = array<i32>} : memref<4x4x4xf32, #tpu.memory_space<vmem>>, vector<4x1x1xf32>,
    %c0_152 = arith.constant 0 : index
    %c12_153 = arith.constant 12 : index
    %c12_154 = arith.constant 12 : index
    %120 = vector.load %arg1[%c0_152, %c12_153, %c12_154] : memref<4x16x16xf32, #tpu.memory_space<vmem>>, vector<4x4x4xf32>
    %cst_155 = arith.constant dense<0xFF800000> : vector<4x4xf32>
    %121 = vector.multi_reduction <maximumf>, %120, %cst_155 [2] : vector<4x4x4xf32> to vector<4x4xf32>
    %122 = vector.shape_cast %121 : vector<4x4xf32> to vector<4x4x1xf32>
    %cst_156 = arith.constant dense<0xFF800000> : vector<4x1xf32>
    %123 = vector.multi_reduction <maximumf>, %122, %cst_156 [1] : vector<4x4x1xf32> to vector<4x1xf32>
    %124 = vector.shape_cast %123 : vector<4x1xf32> to vector<4x1x1xf32>
    %c0_157 = arith.constant 0 : index
    %c3_158 = arith.constant 3 : index
    %c3_159 = arith.constant 3 : index
    %125 = vector.load %arg4[%c0_157, %c3_158, %c3_159] : memref<4x4x4xf32, #tpu.memory_space<vmem>>, vector<4x1x1xf32>
    tpu.vector_store %arg4[%c0_157, %c3_158, %c3_159], %124 {strides = array<i32>} : memref<4x4x4xf32, #tpu.memory_space<vmem>>, vector<4x1x1xf32>,
    return
  }
  func.func @transform_0(%arg0: i32) -> (i32, i32, i32) {
    %c0_i32 = arith.constant 0 : i32
    %c0_i32_0 = arith.constant 0 : i32
    %c0_i32_1 = arith.constant 0 : i32
    return %arg0, %c0_i32, %c0_i32_0 : i32, i32, i32
  }
  func.func @transform_1(%arg0: i32) -> (i32, i32, i32) {
    %c0_i32 = arith.constant 0 : i32
    %c0_i32_0 = arith.constant 0 : i32
    %c0_i32_1 = arith.constant 0 : i32
    return %arg0, %c0_i32, %c0_i32_0 : i32, i32, i32
  }
  func.func @transform_2(%arg0: i32) -> (i32, i32, i32) {
    %c0_i32 = arith.constant 0 : i32
    %c0_i32_0 = arith.constant 0 : i32
    %c0_i32_1 = arith.constant 0 : i32
    return %arg0, %c0_i32, %c0_i32_0 : i32, i32, i32
  }
  func.func @transform_3(%arg0: i32) -> (i32, i32, i32) {
    %c0_i32 = arith.constant 0 : i32
    %c0_i32_0 = arith.constant 0 : i32
    %c0_i32_1 = arith.constant 0 : i32
    return %arg0, %c0_i32, %c0_i32_0 : i32, i32, i32
  }
}

</mosaic_0001>

<llo_original>
// kernel: tpu_custom_call.1
$region0: #{tpu_custom_call.1}
  #allocation0 [shape = 'u32[]', space=smem, size = 0x4, offset = 0x4, fixed_abs, tag = 'smem constant byte address 0x4 - core index']
  #allocation1 [shape = 'u32[144,128]{1,0:T(1,128)}', space=vmem, size = 0x12000, scoped, tag = 'internal scratch']
  %s0 = inlined_call_operand.hbm [shape: f32[8,16,16], index: 0, kind: input, shape index: {}]
  %s1 = inlined_call_operand.vmem [shape: f32[8,1,1], index: 1, kind: output, shape index: {0}]
  %s2 = inlined_call_operand.vmem [shape: f32[8,2,2], index: 2, kind: output, shape index: {1}]
  %s3 = inlined_call_operand.vmem [shape: f32[8,4,4], index: 3, kind: output, shape index: {2}]
  %4 = xla_tuple %s1, %s2, %s3
  %s5 = sld [smem:[#allocation0]]
  $region57: #{tpu_custom_call.1} parent=0
    _
  %s7 = ssub.s32 1, %s5
  %s8 = scalar_select 0, %s7, %s5
  $region1: #{tpu_custom_call.1} parent=0
    #allocation2 [shape = 'u8[65536]{0}', space=vmem, size = 0x10000, scoped, tag = 'input window, operand 0']
    #allocation3 [shape = 's32[2]{0}', space=sflag, size = 0x8, scoped, tag = 'scoped memory for tpu_custom_call.1']
    %9 = vsyncpa [#allocation3], 0
    %s10 = scalar_lea.sflag [#allocation3], 1
    %11 = vsyncpa %s10, 0
    loop: start=0, step=1, limit=4
    $region2: #{tpu_custom_call.1} parent=1 // loop_pre_header
      _
    $region3: #{tpu_custom_call.1} parent=1 // loop_header
      %s13 = sphi 0, %s17
      %p14 = scmp.ge.s32.totalorder %s13, 4
      %s23 = sphi 0, %s25
      %s26 = sphi 0, %s23
      %s27 = sphi 0, %s26
      %s43 = sphi 0, %s27
      %s49 = sphi 0, %s51
      %s52 = sphi 0, %s49
      %s53 = sphi 0, %s52
      %s69 = sphi 0, %s53
      %s75 = sphi 0, %s77
      %s78 = sphi 0, %s75
      %s79 = sphi 0, %s78
      %s95 = sphi 0, %s79
      %s101 = sphi 0, %s103
      %s104 = sphi 0, %s101
      %s105 = sphi 0, %s104
      %s121 = sphi 0, %s105
    $region4: #{tpu_custom_call.1} parent=1 // loop_header_branch
      %16 = sbr.rel (%p14) target = $region8
    $region5: #{tpu_custom_call.1} parent=1 // loop_body
      %s18 = ssub.s32 %s13, 1
      %s19 = ssub.s32 %s13, 2
      %s20 = sadd.s32 %s13, 1
      %s21 = ssub.s32 %s13, %s20
      %p22 = scmp.eq.s32.totalorder %s21, 0
      %s24 = sadd.s32 %s23, 1
      %s25 = scalar_select %p22, %s23, %s24
      %p28 = pneg %p22
      %p29 = scmp.eq.s32.totalorder %s13, 1
      %p30 = por %p28, %p29
      %p31 = scmp.ne.s32.totalorder %s23, %s26
      %p32 = scmp.eq.s32.totalorder %s13, 0
      %p33 = por %p31, %p32
      %p34 = scmp.ne.s32.totalorder %s23, %s26
      %p35 = scmp.eq.s32.totalorder %s18, 1
      %p36 = por %p34, %p35
      %p37 = scmp.ne.s32.totalorder %s26, %s27
      %p38 = scmp.eq.s32.totalorder %s18, 0
      %p39 = por %p37, %p38
      %p40 = scmp.ne.s32.totalorder %s26, %s27
      %p41 = scmp.eq.s32.totalorder %s19, 1
      %p42 = por %p40, %p41
      %p44 = scmp.ne.s32.totalorder %s27, %s43
      %p45 = scmp.eq.s32.totalorder %s19, 0
      %p46 = por %p44, %p45
      %s47 = ssub.s32 %s13, %s20
      %p48 = scmp.eq.s32.totalorder %s47, 0
      %s50 = sadd.s32 %s49, 1
      %s51 = scalar_select %p48, %s49, %s50
      %p54 = pneg %p48
      %p55 = scmp.eq.s32.totalorder %s13, 1
      %p56 = por %p54, %p55
      %p57 = scmp.ne.s32.totalorder %s49, %s52
      %p58 = scmp.eq.s32.totalorder %s13, 0
      %p59 = por %p57, %p58
      %p60 = scmp.ne.s32.totalorder %s49, %s52
      %p61 = scmp.eq.s32.totalorder %s18, 1
      %p62 = por %p60, %p61
      %p63 = scmp.ne.s32.totalorder %s52, %s53
      %p64 = scmp.eq.s32.totalorder %s18, 0
      %p65 = por %p63, %p64
      %p66 = scmp.ne.s32.totalorder %s52, %s53
      %p67 = scmp.eq.s32.totalorder %s19, 1
      %p68 = por %p66, %p67
      %p70 = scmp.ne.s32.totalorder %s53, %s69
      %p71 = scmp.eq.s32.totalorder %s19, 0
      %p72 = por %p70, %p71
      %s73 = ssub.s32 %s13, %s20
      %p74 = scmp.eq.s32.totalorder %s73, 0
      %s76 = sadd.s32 %s75, 1
      %s77 = scalar_select %p74, %s75, %s76
      %p80 = pneg %p74
      %p81 = scmp.eq.s32.totalorder %s13, 1
      %p82 = por %p80, %p81
      %p83 = scmp.ne.s32.totalorder %s75, %s78
      %p84 = scmp.eq.s32.totalorder %s13, 0
      %p85 = por %p83, %p84
      %p86 = scmp.ne.s32.totalorder %s75, %s78
      %p87 = scmp.eq.s32.totalorder %s18, 1
      %p88 = por %p86, %p87
      %p89 = scmp.ne.s32.totalorder %s78, %s79
      %p90 = scmp.eq.s32.totalorder %s18, 0
      %p91 = por %p89, %p90
      %p92 = scmp.ne.s32.totalorder %s78, %s79
      %p93 = scmp.eq.s32.totalorder %s19, 1
      %p94 = por %p92, %p93
      %p96 = scmp.ne.s32.totalorder %s79, %s95
      %p97 = scmp.eq.s32.totalorder %s19, 0
      %p98 = por %p96, %p97
      %s99 = ssub.s32 %s13, %s20
      %p100 = scmp.eq.s32.totalorder %s99, 0
      %s102 = sadd.s32 %s101, 1
      %s103 = scalar_select %p100, %s101, %s102
      %p106 = pneg %p100
      %p107 = scmp.eq.s32.totalorder %s13, 1
      %p108 = por %p106, %p107
      %p109 = scmp.ne.s32.totalorder %s101, %s104
      %p110 = scmp.eq.s32.totalorder %s13, 0
      %p111 = por %p109, %p110
      %p112 = scmp.ne.s32.totalorder %s101, %s104
      %p113 = scmp.eq.s32.totalorder %s18, 1
      %p114 = por %p112, %p113
      %p115 = scmp.ne.s32.totalorder %s104, %s105
      %p116 = scmp.eq.s32.totalorder %s18, 0
      %p117 = por %p115, %p116
      %p118 = scmp.ne.s32.totalorder %s104, %s105
      %p119 = scmp.eq.s32.totalorder %s19, 1
      %p120 = por %p118, %p119
      %p122 = scmp.ne.s32.totalorder %s105, %s121
      %p123 = scmp.eq.s32.totalorder %s19, 0
      %p124 = por %p122, %p123
      %p125 = scmp.le.s32.totalorder 1, %s13
      %p126 = scmp.lt.s32.totalorder %s13, 3
      %p127 = pnand %p125, %p126
      %p128 = pneg %p127
      // Predicated region
      $region9: #{tpu_custom_call.1} parent=5 // pred_check
        _
      $region10: #{tpu_custom_call.1} parent=5 // pred_check_branch
        %130 = sbr.rel (%p127) target = $region12
      $region11: #{tpu_custom_call.1} parent=5 // pred_region
        %s131 = ssub.s32 %s13, 1
      $region12: #{tpu_custom_call.1} parent=5 // pred_fallthru
        _
      %p132 = scmp.lt.s32.totalorder %s13, 2
      // Predicated region
      $region13: #{tpu_custom_call.1} parent=5 // pred_check
        %p133 = pneg %p132
      $region14: #{tpu_custom_call.1} parent=5 // pred_check_branch
        %135 = sbr.rel (%p133) target = $region16
      $region15: #{tpu_custom_call.1} parent=5 // pred_region
        // Predicated region
        $region17: #{tpu_custom_call.1} parent=15 // pred_check
          %p136 = pneg %p33
        $region18: #{tpu_custom_call.1} parent=15 // pred_check_branch
          %138 = sbr.rel (%p136) target = $region20
        $region19: #{tpu_custom_call.1} parent=15 // pred_region
          %s139 = sand.u32 %s23, 1
          %s140 = scalar_lea.sflag [#allocation3], %s139
          %s141 = sand.u32 %s23, 1
          %s142 = smul.addr %s141, 64
          %s143 = scalar_lea.vmem [#allocation2], %s142
          %s144 = smul.u32 4, %s13
          %s146 = ssub.s32 1024, 1024
          %147 = vsyncadd %s140, %s146
          %s148 = smul.addr %s144, 2
          %s149 = smul.addr %s148, 128
          %s150 = scalar_lea.hbm %s0, %s149
          %s151 = sshll.u32 %s143, 4
          %s152 = int_to_ptr.vmem [resolvable:$true] %s151
          %157 = dma.hbm_to_vmem [thread:$0]  %s150, 1024, %s152, %s140, 128, 128, 8
        $region20: #{tpu_custom_call.1} parent=15 // pred_fallthru
          _
      $region16: #{tpu_custom_call.1} parent=5 // pred_fallthru
        _
      %p158 = scmp.le.s32.totalorder 1, %s13
      %p159 = scmp.lt.s32.totalorder %s13, 3
      %p160 = pnand %p158, %p159
      %p161 = pneg %p160
      // Predicated region
      $region21: #{tpu_custom_call.1} parent=5 // pred_check
        _
      $region22: #{tpu_custom_call.1} parent=5 // pred_check_branch
        %163 = sbr.rel (%p160) target = $region24
      $region23: #{tpu_custom_call.1} parent=5 // pred_region
        %s164 = ssub.s32 %s13, 1
        %s165 = sand.u32 %s26, 1
        %s166 = scalar_lea.sflag [#allocation3], %s165
        %s167 = sand.u32 %s26, 1
        %s168 = smul.addr %s167, 64
        %s169 = scalar_lea.vmem [#allocation2], %s168
        // Predicated region
        $region25: #{tpu_custom_call.1} parent=23 // pred_check
          %p170 = pneg %p39
        $region26: #{tpu_custom_call.1} parent=23 // pred_check_branch
          %172 = sbr.rel (%p170) target = $region28
        $region27: #{tpu_custom_call.1} parent=23 // pred_region
          %173 = dma.done %s166, 1024
        $region28: #{tpu_custom_call.1} parent=23 // pred_fallthru
          _
        %s174 = sand.u32 %s26, 1
        %s175 = scalar_lea.sflag [#allocation3], %s174
        %s176 = sand.u32 %s26, 1
        %s177 = smul.addr %s176, 64
        %s178 = scalar_lea.vmem [#allocation2], %s177
        %p179 = pneg %p39
        %p180 = pneg %p36
        %p181 = pneg %p65
        %p182 = pneg %p62
        %s183 = smul.u32 4, %s18
        %p184 = scmp.lt.s32.totalorder %s183, 7
        %s185 = scalar_select %p184, %s183, 7
        %s186 = scalar_lea.vmem %s1, %s185
        %p187 = pneg %p91
        %p188 = pneg %p88
        %s189 = smul.u32 4, %s18
        %p190 = scmp.lt.s32.totalorder %s189, 7
        %s191 = scalar_select %p190, %s189, 7
        %s192 = smul.addr %s191, 2
        %s193 = scalar_lea.vmem %s2, %s192
        %p194 = pneg %p117
        %p195 = pneg %p114
        %s196 = smul.u32 4, %s18
        %p197 = scmp.lt.s32.totalorder %s196, 7
        %s198 = scalar_select %p197, %s196, 7
        %s199 = smul.addr %s198, 4
        %s200 = scalar_lea.vmem %s3, %s199
        %s201 = smul.u32 4, %s18
        %s202 = smul.u32 4, %s18
        %p203 = scmp.lt.s32.totalorder %s202, 7
        %s204 = scalar_select %p203, %s202, 7
        %s205 = scalar_lea.vmem %s1, %s204
        %s206 = smul.u32 4, %s18
        %s207 = smul.u32 4, %s18
        %p208 = scmp.lt.s32.totalorder %s207, 7
        %s209 = scalar_select %p208, %s207, 7
        %s210 = smul.addr %s209, 2
        %s211 = scalar_lea.vmem %s2, %s210
        %s212 = smul.u32 4, %s18
        %s213 = smul.u32 4, %s18
        %p214 = scmp.lt.s32.totalorder %s213, 7
        %s215 = scalar_select %p214, %s213, 7
        %s216 = smul.addr %s215, 4
        %s217 = scalar_lea.vmem %s3, %s216
        %s218 = smul.u32 4, %s18
        %v219 = vld [vmem:[%s169] sm:$0xff]
        %v220 = vld [vmem:[%s169 + $0x8] sm:$0xff]
        %v221 = vld [vmem:[%s169 + $0x10] sm:$0xff]
        %v222 = vld [vmem:[%s169 + $0x18] sm:$0xff]
        %v223 = vld [vmem:[%s169 + $0x20] sm:$0xff]
        %v224 = vld [vmem:[%s169 + $0x28] sm:$0xff]
        %v225 = vld [vmem:[%s169 + $0x30] sm:$0xff]
        %v226 = vld [vmem:[%s169 + $0x38] sm:$0xff]
        %vm227 = vcmask 130048
        %v228 = vsel %vm227, %v219, -inf
        %229 = vmax.xlane.f32.xlu0 %v228
        %v230 = vpop.xlane.xlu0 %229
        %v231 = vsel %vm227, %v220, -inf
        %232 = vmax.xlane.f32.xlu0 %v231
        %v233 = vpop.xlane.xlu0 %232
        %v234 = vsel %vm227, %v221, -inf
        %235 = vmax.xlane.f32.xlu0 %v234
        %v236 = vpop.xlane.xlu0 %235
        %v237 = vsel %vm227, %v222, -inf
        %238 = vmax.xlane.f32.xlu0 %v237
        %v239 = vpop.xlane.xlu0 %238
        %v240 = vsel %vm227, %v223, -inf
        %241 = vmax.xlane.f32.xlu0 %v240
        %v242 = vpop.xlane.xlu0 %241
        %v243 = vsel %vm227, %v224, -inf
        %244 = vmax.xlane.f32.xlu0 %v243
        %v245 = vpop.xlane.xlu0 %244
        %v246 = vsel %vm227, %v225, -inf
        %247 = vmax.xlane.f32.xlu0 %v246
        %v248 = vpop.xlane.xlu0 %247
        %v249 = vsel %vm227, %v226, -inf
        %250 = vmax.xlane.f32.xlu0 %v249
        %v251 = vpop.xlane.xlu0 %250
        %v252 = vmax.f32 %v230, %v233
        %v253 = vrot.slane %v252, 4
        %v254 = vmax.f32 %v252, %v253
        %v255 = vrot.slane %v254, 2
        %v256 = vmax.f32 %v254, %v255
        %v257 = vrot.slane %v256, 1
        %v258 = vmax.f32 %v256, %v257
        %v259 = vmax.f32 %v236, %v239
        %v260 = vrot.slane %v259, 4
        %v261 = vmax.f32 %v259, %v260
        %v262 = vrot.slane %v261, 2
        %v263 = vmax.f32 %v261, %v262
        %v264 = vrot.slane %v263, 1
        %v265 = vmax.f32 %v263, %v264
        %v266 = vmax.f32 %v242, %v245
        %v267 = vrot.slane %v266, 4
        %v268 = vmax.f32 %v266, %v267
        %v269 = vrot.slane %v268, 2
        %v270 = vmax.f32 %v268, %v269
        %v271 = vrot.slane %v270, 1
        %v272 = vmax.f32 %v270, %v271
        %v273 = vmax.f32 %v248, %v251
        %v274 = vrot.slane %v273, 4
        %v275 = vmax.f32 %v273, %v274
        %v276 = vrot.slane %v275, 2
        %v277 = vmax.f32 %v275, %v276
        %v278 = vrot.slane %v277, 1
        %v279 = vmax.f32 %v277, %v278
        %vm280 = vcmask 0
        %281 = vst.msk [vmem:[%s205] sm:$0x1] %vm280, %v258
        %282 = vst.msk [vmem:[%s205 + $0x1] sm:$0x1] %vm280, %v265
        %283 = vst.msk [vmem:[%s205 + $0x2] sm:$0x1] %vm280, %v272
        %284 = vst.msk [vmem:[%s205 + $0x3] sm:$0x1] %vm280, %v279
        %v285 = vld [vmem:[%s169] sm:$0xff]
        %v286 = vld [vmem:[%s169 + $0x10] sm:$0xff]
        %v287 = vld [vmem:[%s169 + $0x20] sm:$0xff]
        %v288 = vld [vmem:[%s169 + $0x30] sm:$0xff]
        %vm289 = vcmask 64512
        %v290 = vsel %vm289, %v285, -inf
        %291 = vmax.xlane.f32.xlu0 %v290
        %v292 = vpop.xlane.xlu0 %291
        %v293 = vsel %vm289, %v286, -inf
        %294 = vmax.xlane.f32.xlu0 %v293
        %v295 = vpop.xlane.xlu0 %294
        %v296 = vsel %vm289, %v287, -inf
        %297 = vmax.xlane.f32.xlu0 %v296
        %v298 = vpop.xlane.xlu0 %297
        %v299 = vsel %vm289, %v288, -inf
        %300 = vmax.xlane.f32.xlu0 %v299
        %v301 = vpop.xlane.xlu0 %300
        %v302 = vrot.slane %v292, 4
        %v303 = vmax.f32 %v292, %v302
        %v304 = vrot.slane %v303, 2
        %v305 = vmax.f32 %v303, %v304
        %v306 = vrot.slane %v305, 1
        %v307 = vmax.f32 %v305, %v306
        %v308 = vrot.slane %v295, 4
        %v309 = vmax.f32 %v295, %v308
        %v310 = vrot.slane %v309, 2
        %v311 = vmax.f32 %v309, %v310
        %v312 = vrot.slane %v311, 1
        %v313 = vmax.f32 %v311, %v312
        %v314 = vrot.slane %v298, 4
        %v315 = vmax.f32 %v298, %v314
        %v316 = vrot.slane %v315, 2
        %v317 = vmax.f32 %v315, %v316
        %v318 = vrot.slane %v317, 1
        %v319 = vmax.f32 %v317, %v318
        %v320 = vrot.slane %v301, 4
        %v321 = vmax.f32 %v301, %v320
        %v322 = vrot.slane %v321, 2
        %v323 = vmax.f32 %v321, %v322
        %v324 = vrot.slane %v323, 1
        %v325 = vmax.f32 %v323, %v324
        %326 = vst.msk [vmem:[%s211] sm:$0x1] %vm280, %v307
        %327 = vst.msk [vmem:[%s211 + $0x2] sm:$0x1] %vm280, %v313
        %328 = vst.msk [vmem:[%s211 + $0x4] sm:$0x1] %vm280, %v319
        %329 = vst.msk [vmem:[%s211 + $0x6] sm:$0x1] %vm280, %v325
        %v330 = vld [vmem:[%s169] sm:$0xff]
        %v331 = vld [vmem:[%s169 + $0x10] sm:$0xff]
        %v332 = vld [vmem:[%s169 + $0x20] sm:$0xff]
        %v333 = vld [vmem:[%s169 + $0x30] sm:$0xff]
        %vm334 = vcmask 130112
        %v335 = vsel %vm334, %v330, -inf
        %336 = vmax.xlane.f32.xlu0 %v335
        %v337 = vpop.xlane.xlu0 %336
        %v338 = vsel %vm334, %v331, -inf
        %339 = vmax.xlane.f32.xlu0 %v338
        %v340 = vpop.xlane.xlu0 %339
        %v341 = vsel %vm334, %v332, -inf
        %342 = vmax.xlane.f32.xlu0 %v341
        %v343 = vpop.xlane.xlu0 %342
        %v344 = vsel %vm334, %v333, -inf
        %345 = vmax.xlane.f32.xlu0 %v344
        %v346 = vpop.xlane.xlu0 %345
        %v347 = vrot.slane %v337, 4
        %v348 = vmax.f32 %v337, %v347
        %v349 = vrot.slane %v348, 2
        %v350 = vmax.f32 %v348, %v349
        %v351 = vrot.slane %v350, 1
        %v352 = vmax.f32 %v350, %v351
        %v353 = vrot.slane %v340, 4
        %v354 = vmax.f32 %v340, %v353
        %v355 = vrot.slane %v354, 2
        %v356 = vmax.f32 %v354, %v355
        %v357 = vrot.slane %v356, 1
        %v358 = vmax.f32 %v356, %v357
        %v359 = vrot.slane %v343, 4
        %v360 = vmax.f32 %v343, %v359
        %v361 = vrot.slane %v360, 2
        %v362 = vmax.f32 %v360, %v361
        %v363 = vrot.slane %v362, 1
        %v364 = vmax.f32 %v362, %v363
        %v365 = vrot.slane %v346, 4
        %v366 = vmax.f32 %v346, %v365
        %v367 = vrot.slane %v366, 2
        %v368 = vmax.f32 %v366, %v367
        %v369 = vrot.slane %v368, 1
        %v370 = vmax.f32 %v368, %v369
        %vm371 = vcmask 8200
        %372 = vst.msk [vmem:[%s211] sm:$0x1] %vm371, %v352
        %373 = vst.msk [vmem:[%s211 + $0x2] sm:$0x1] %vm371, %v358
        %374 = vst.msk [vmem:[%s211 + $0x4] sm:$0x1] %vm371, %v364
        %375 = vst.msk [vmem:[%s211 + $0x6] sm:$0x1] %vm371, %v370
        %v376 = vld [vmem:[%s169 + $0x8] sm:$0xff]
        %v377 = vld [vmem:[%s169 + $0x18] sm:$0xff]
        %v378 = vld [vmem:[%s169 + $0x28] sm:$0xff]
        %v379 = vld [vmem:[%s169 + $0x38] sm:$0xff]
        %v380 = vsel %vm289, %v376, -inf
        %381 = vmax.xlane.f32.xlu0 %v380
        %v382 = vpop.xlane.xlu0 %381
        %v383 = vsel %vm289, %v377, -inf
        %384 = vmax.xlane.f32.xlu0 %v383
        %v385 = vpop.xlane.xlu0 %384
        %v386 = vsel %vm289, %v378, -inf
        %387 = vmax.xlane.f32.xlu0 %v386
        %v388 = vpop.xlane.xlu0 %387
        %v389 = vsel %vm289, %v379, -inf
        %390 = vmax.xlane.f32.xlu0 %v389
        %v391 = vpop.xlane.xlu0 %390
        %v392 = vrot.slane %v382, 4
        %v393 = vmax.f32 %v382, %v392
        %v394 = vrot.slane %v393, 2
        %v395 = vmax.f32 %v393, %v394
        %v396 = vrot.slane %v395, 1
        %v397 = vmax.f32 %v395, %v396
        %v398 = vrot.slane %v385, 4
        %v399 = vmax.f32 %v385, %v398
        %v400 = vrot.slane %v399, 2
        %v401 = vmax.f32 %v399, %v400
        %v402 = vrot.slane %v401, 1
        %v403 = vmax.f32 %v401, %v402
        %v404 = vrot.slane %v388, 4
        %v405 = vmax.f32 %v388, %v404
        %v406 = vrot.slane %v405, 2
        %v407 = vmax.f32 %v405, %v406
        %v408 = vrot.slane %v407, 1
        %v409 = vmax.f32 %v407, %v408
        %v410 = vrot.slane %v391, 4
        %v411 = vmax.f32 %v391, %v410
        %v412 = vrot.slane %v411, 2
        %v413 = vmax.f32 %v411, %v412
        %v414 = vrot.slane %v413, 1
        %v415 = vmax.f32 %v413, %v414
        %416 = vst.msk [vmem:[%s211 + $0x1] sm:$0x1] %vm280, %v397
        %417 = vst.msk [vmem:[%s211 + $0x3] sm:$0x1] %vm280, %v403
        %418 = vst.msk [vmem:[%s211 + $0x5] sm:$0x1] %vm280, %v409
        %419 = vst.msk [vmem:[%s211 + $0x7] sm:$0x1] %vm280, %v415
        %v420 = vld [vmem:[%s169 + $0x8] sm:$0xff]
        %v421 = vld [vmem:[%s169 + $0x18] sm:$0xff]
        %v422 = vld [vmem:[%s169 + $0x28] sm:$0xff]
        %v423 = vld [vmem:[%s169 + $0x38] sm:$0xff]
        %v424 = vsel %vm334, %v420, -inf
        %425 = vmax.xlane.f32.xlu0 %v424
        %v426 = vpop.xlane.xlu0 %425
        %v427 = vsel %vm334, %v421, -inf
        %428 = vmax.xlane.f32.xlu0 %v427
        %v429 = vpop.xlane.xlu0 %428
        %v430 = vsel %vm334, %v422, -inf
        %431 = vmax.xlane.f32.xlu0 %v430
        %v432 = vpop.xlane.xlu0 %431
        %v433 = vsel %vm334, %v423, -inf
        %434 = vmax.xlane.f32.xlu0 %v433
        %v435 = vpop.xlane.xlu0 %434
        %v436 = vrot.slane %v426, 4
        %v437 = vmax.f32 %v426, %v436
        %v438 = vrot.slane %v437, 2
        %v439 = vmax.f32 %v437, %v438
        %v440 = vrot.slane %v439, 1
        %v441 = vmax.f32 %v439, %v440
        %v442 = vrot.slane %v429, 4
        %v443 = vmax.f32 %v429, %v442
        %v444 = vrot.slane %v443, 2
        %v445 = vmax.f32 %v443, %v444
        %v446 = vrot.slane %v445, 1
        %v447 = vmax.f32 %v445, %v446
        %v448 = vrot.slane %v432, 4
        %v449 = vmax.f32 %v432, %v448
        %v450 = vrot.slane %v449, 2
        %v451 = vmax.f32 %v449, %v450
        %v452 = vrot.slane %v451, 1
        %v453 = vmax.f32 %v451, %v452
        %v454 = vrot.slane %v435, 4
        %v455 = vmax.f32 %v435, %v454
        %v456 = vrot.slane %v455, 2
        %v457 = vmax.f32 %v455, %v456
        %v458 = vrot.slane %v457, 1
        %v459 = vmax.f32 %v457, %v458
        %460 = vst.msk [vmem:[%s211 + $0x1] sm:$0x1] %vm371, %v441
        %461 = vst.msk [vmem:[%s211 + $0x3] sm:$0x1] %vm371, %v447
        %462 = vst.msk [vmem:[%s211 + $0x5] sm:$0x1] %vm371, %v453
        %463 = vst.msk [vmem:[%s211 + $0x7] sm:$0x1] %vm371, %v459
        %v464 = vld [vmem:[%s169] sm:$0xf]
        %v465 = vld [vmem:[%s169 + $0x10] sm:$0xf]
        %v466 = vld [vmem:[%s169 + $0x20] sm:$0xf]
        %v467 = vld [vmem:[%s169 + $0x30] sm:$0xf]
        %vm468 = vcmask 27648
        %v469 = vsel %vm468, %v464, -inf
        %470 = vmax.xlane.f32.xlu0 %v469
        %v471 = vpop.xlane.xlu0 %470
        %v472 = vsel %vm468, %v465, -inf
        %473 = vmax.xlane.f32.xlu0 %v472
        %v474 = vpop.xlane.xlu0 %473
        %v475 = vsel %vm468, %v466, -inf
        %476 = vmax.xlane.f32.xlu0 %v475
        %v477 = vpop.xlane.xlu0 %476
        %v478 = vsel %vm468, %v467, -inf
        %479 = vmax.xlane.f32.xlu0 %v478
        %v480 = vpop.xlane.xlu0 %479
        %vm481 = vcmask 1043456
        %v482 = vsel %vm481, %v471, -inf
        %v483 = vrot.slane %v482, 4
        %v484 = vmax.f32 %v482, %v483
        %v485 = vrot.slane %v484, 2
        %v486 = vmax.f32 %v484, %v485
        %v487 = vrot.slane %v486, 1
        %v488 = vmax.f32 %v486, %v487
        %v489 = vsel %vm481, %v474, -inf
        %v490 = vrot.slane %v489, 4
        %v491 = vmax.f32 %v489, %v490
        %v492 = vrot.slane %v491, 2
        %v493 = vmax.f32 %v491, %v492
        %v494 = vrot.slane %v493, 1
        %v495 = vmax.f32 %v493, %v494
        %v496 = vsel %vm481, %v477, -inf
        %v497 = vrot.slane %v496, 4
        %v498 = vmax.f32 %v496, %v497
        %v499 = vrot.slane %v498, 2
        %v500 = vmax.f32 %v498, %v499
        %v501 = vrot.slane %v500, 1
        %v502 = vmax.f32 %v500, %v501
        %v503 = vsel %vm481, %v480, -inf
        %v504 = vrot.slane %v503, 4
        %v505 = vmax.f32 %v503, %v504
        %v506 = vrot.slane %v505, 2
        %v507 = vmax.f32 %v505, %v506
        %v508 = vrot.slane %v507, 1
        %v509 = vmax.f32 %v507, %v508
        %510 = vst.msk [vmem:[%s217] sm:$0x1] %vm280, %v488
        %511 = vst.msk [vmem:[%s217 + $0x4] sm:$0x1] %vm280, %v495
        %512 = vst.msk [vmem:[%s217 + $0x8] sm:$0x1] %vm280, %v502
        %513 = vst.msk [vmem:[%s217 + $0xc] sm:$0x1] %vm280, %v509
        %v514 = vld [vmem:[%s169] sm:$0xf]
        %v515 = vld [vmem:[%s169 + $0x10] sm:$0xf]
        %v516 = vld [vmem:[%s169 + $0x20] sm:$0xf]
        %v517 = vld [vmem:[%s169 + $0x30] sm:$0xf]
        %vm518 = vcmask 60448
        %v519 = vsel %vm518, %v514, -inf
        %520 = vmax.xlane.f32.xlu0 %v519
        %v521 = vpop.xlane.xlu0 %520
        %v522 = vsel %vm518, %v515, -inf
        %523 = vmax.xlane.f32.xlu0 %v522
        %v524 = vpop.xlane.xlu0 %523
        %v525 = vsel %vm518, %v516, -inf
        %526 = vmax.xlane.f32.xlu0 %v525
        %v527 = vpop.xlane.xlu0 %526
        %v528 = vsel %vm518, %v517, -inf
        %529 = vmax.xlane.f32.xlu0 %v528
        %v530 = vpop.xlane.xlu0 %529
        %v531 = vsel %vm481, %v521, -inf
        %v532 = vrot.slane %v531, 4
        %v533 = vmax.f32 %v531, %v532
        %v534 = vrot.slane %v533, 2
        %v535 = vmax.f32 %v533, %v534
        %v536 = vrot.slane %v535, 1
        %v537 = vmax.f32 %v535, %v536
        %v538 = vsel %vm481, %v524, -inf
        %v539 = vrot.slane %v538, 4
        %v540 = vmax.f32 %v538, %v539
        %v541 = vrot.slane %v540, 2
        %v542 = vmax.f32 %v540, %v541
        %v543 = vrot.slane %v542, 1
        %v544 = vmax.f32 %v542, %v543
        %v545 = vsel %vm481, %v527, -inf
        %v546 = vrot.slane %v545, 4
        %v547 = vmax.f32 %v545, %v546
        %v548 = vrot.slane %v547, 2
        %v549 = vmax.f32 %v547, %v548
        %v550 = vrot.slane %v549, 1
        %v551 = vmax.f32 %v549, %v550
        %v552 = vsel %vm481, %v530, -inf
        %v553 = vrot.slane %v552, 4
        %v554 = vmax.f32 %v552, %v553
        %v555 = vrot.slane %v554, 2
        %v556 = vmax.f32 %v554, %v555
        %v557 = vrot.slane %v556, 1
        %v558 = vmax.f32 %v556, %v557
        %559 = vst.msk [vmem:[%s217] sm:$0x1] %vm371, %v537
        %560 = vst.msk [vmem:[%s217 + $0x4] sm:$0x1] %vm371, %v544
        %561 = vst.msk [vmem:[%s217 + $0x8] sm:$0x1] %vm371, %v551
        %562 = vst.msk [vmem:[%s217 + $0xc] sm:$0x1] %vm371, %v558
        %v563 = vld [vmem:[%s169] sm:$0xf]
        %v564 = vld [vmem:[%s169 + $0x10] sm:$0xf]
        %v565 = vld [vmem:[%s169 + $0x20] sm:$0xf]
        %v566 = vld [vmem:[%s169 + $0x30] sm:$0xf]
        %vm567 = vcmask 93248
        %v568 = vsel %vm567, %v563, -inf
        %569 = vmax.xlane.f32.xlu0 %v568
        %v570 = vpop.xlane.xlu0 %569
        %v571 = vsel %vm567, %v564, -inf
        %572 = vmax.xlane.f32.xlu0 %v571
        %v573 = vpop.xlane.xlu0 %572
        %v574 = vsel %vm567, %v565, -inf
        %575 = vmax.xlane.f32.xlu0 %v574
        %v576 = vpop.xlane.xlu0 %575
        %v577 = vsel %vm567, %v566, -inf
        %578 = vmax.xlane.f32.xlu0 %v577
        %v579 = vpop.xlane.xlu0 %578
        %v580 = vsel %vm481, %v570, -inf
        %v581 = vrot.slane %v580, 4
        %v582 = vmax.f32 %v580, %v581
        %v583 = vrot.slane %v582, 2
        %v584 = vmax.f32 %v582, %v583
        %v585 = vrot.slane %v584, 1
        %v586 = vmax.f32 %v584, %v585
        %v587 = vsel %vm481, %v573, -inf
        %v588 = vrot.slane %v587, 4
        %v589 = vmax.f32 %v587, %v588
        %v590 = vrot.slane %v589, 2
        %v591 = vmax.f32 %v589, %v590
        %v592 = vrot.slane %v591, 1
        %v593 = vmax.f32 %v591, %v592
        %v594 = vsel %vm481, %v576, -inf
        %v595 = vrot.slane %v594, 4
        %v596 = vmax.f32 %v594, %v595
        %v597 = vrot.slane %v596, 2
        %v598 = vmax.f32 %v596, %v597
        %v599 = vrot.slane %v598, 1
        %v600 = vmax.f32 %v598, %v599
        %v601 = vsel %vm481, %v579, -inf
        %v602 = vrot.slane %v601, 4
        %v603 = vmax.f32 %v601, %v602
        %v604 = vrot.slane %v603, 2
        %v605 = vmax.f32 %v603, %v604
        %v606 = vrot.slane %v605, 1
        %v607 = vmax.f32 %v605, %v606
        %vm608 = vcmask 16400
        %609 = vst.msk [vmem:[%s217] sm:$0x1] %vm608, %v586
        %610 = vst.msk [vmem:[%s217 + $0x4] sm:$0x1] %vm608, %v593
        %611 = vst.msk [vmem:[%s217 + $0x8] sm:$0x1] %vm608, %v600
        %612 = vst.msk [vmem:[%s217 + $0xc] sm:$0x1] %vm608, %v607
        %v613 = vld [vmem:[%s169] sm:$0xf]
        %v614 = vld [vmem:[%s169 + $0x10] sm:$0xf]
        %v615 = vld [vmem:[%s169 + $0x20] sm:$0xf]
        %v616 = vld [vmem:[%s169 + $0x30] sm:$0xf]
        %vm617 = vcmask 126048
        %v618 = vsel %vm617, %v613, -inf
        %619 = vmax.xlane.f32.xlu0 %v618
        %v620 = vpop.xlane.xlu0 %619
        %v621 = vsel %vm617, %v614, -inf
        %622 = vmax.xlane.f32.xlu0 %v621
        %v623 = vpop.xlane.xlu0 %622
        %v624 = vsel %vm617, %v615, -inf
        %625 = vmax.xlane.f32.xlu0 %v624
        %v626 = vpop.xlane.xlu0 %625
        %v627 = vsel %vm617, %v616, -inf
        %628 = vmax.xlane.f32.xlu0 %v627
        %v629 = vpop.xlane.xlu0 %628
        %v630 = vsel %vm481, %v620, -inf
        %v631 = vrot.slane %v630, 4
        %v632 = vmax.f32 %v630, %v631
        %v633 = vrot.slane %v632, 2
        %v634 = vmax.f32 %v632, %v633
        %v635 = vrot.slane %v634, 1
        %v636 = vmax.f32 %v634, %v635
        %v637 = vsel %vm481, %v623, -inf
        %v638 = vrot.slane %v637, 4
        %v639 = vmax.f32 %v637, %v638
        %v640 = vrot.slane %v639, 2
        %v641 = vmax.f32 %v639, %v640
        %v642 = vrot.slane %v641, 1
        %v643 = vmax.f32 %v641, %v642
        %v644 = vsel %vm481, %v626, -inf
        %v645 = vrot.slane %v644, 4
        %v646 = vmax.f32 %v644, %v645
        %v647 = vrot.slane %v646, 2
        %v648 = vmax.f32 %v646, %v647
        %v649 = vrot.slane %v648, 1
        %v650 = vmax.f32 %v648, %v649
        %v651 = vsel %vm481, %v629, -inf
        %v652 = vrot.slane %v651, 4
        %v653 = vmax.f32 %v651, %v652
        %v654 = vrot.slane %v653, 2
        %v655 = vmax.f32 %v653, %v654
        %v656 = vrot.slane %v655, 1
        %v657 = vmax.f32 %v655, %v656
        %vm658 = vcmask 24600
        %659 = vst.msk [vmem:[%s217] sm:$0x1] %vm658, %v636
        %660 = vst.msk [vmem:[%s217 + $0x4] sm:$0x1] %vm658, %v643
        %661 = vst.msk [vmem:[%s217 + $0x8] sm:$0x1] %vm658, %v650
        %662 = vst.msk [vmem:[%s217 + $0xc] sm:$0x1] %vm658, %v657
        %v663 = vld [vmem:[%s169 + $0x4] sm:$0xf]
        %v664 = vld [vmem:[%s169 + $0x14] sm:$0xf]
        %v665 = vld [vmem:[%s169 + $0x24] sm:$0xf]
        %v666 = vld [vmem:[%s169 + $0x34] sm:$0xf]
        %v667 = vsel %vm468, %v663, -inf
        %668 = vmax.xlane.f32.xlu0 %v667
        %v669 = vpop.xlane.xlu0 %668
        %v670 = vsel %vm468, %v664, -inf
        %671 = vmax.xlane.f32.xlu0 %v670
        %v672 = vpop.xlane.xlu0 %671
        %v673 = vsel %vm468, %v665, -inf
        %674 = vmax.xlane.f32.xlu0 %v673
        %v675 = vpop.xlane.xlu0 %674
        %v676 = vsel %vm468, %v666, -inf
        %677 = vmax.xlane.f32.xlu0 %v676
        %v678 = vpop.xlane.xlu0 %677
        %v679 = vsel %vm481, %v669, -inf
        %v680 = vrot.slane %v679, 4
        %v681 = vmax.f32 %v679, %v680
        %v682 = vrot.slane %v681, 2
        %v683 = vmax.f32 %v681, %v682
        %v684 = vrot.slane %v683, 1
        %v685 = vmax.f32 %v683, %v684
        %v686 = vsel %vm481, %v672, -inf
        %v687 = vrot.slane %v686, 4
        %v688 = vmax.f32 %v686, %v687
        %v689 = vrot.slane %v688, 2
        %v690 = vmax.f32 %v688, %v689
        %v691 = vrot.slane %v690, 1
        %v692 = vmax.f32 %v690, %v691
        %v693 = vsel %vm481, %v675, -inf
        %v694 = vrot.slane %v693, 4
        %v695 = vmax.f32 %v693, %v694
        %v696 = vrot.slane %v695, 2
        %v697 = vmax.f32 %v695, %v696
        %v698 = vrot.slane %v697, 1
        %v699 = vmax.f32 %v697, %v698
        %v700 = vsel %vm481, %v678, -inf
        %v701 = vrot.slane %v700, 4
        %v702 = vmax.f32 %v700, %v701
        %v703 = vrot.slane %v702, 2
        %v704 = vmax.f32 %v702, %v703
        %v705 = vrot.slane %v704, 1
        %v706 = vmax.f32 %v704, %v705
        %707 = vst.msk [vmem:[%s217 + $0x1] sm:$0x1] %vm280, %v685
        %708 = vst.msk [vmem:[%s217 + $0x5] sm:$0x1] %vm280, %v692
        %709 = vst.msk [vmem:[%s217 + $0x9] sm:$0x1] %vm280, %v699
        %710 = vst.msk [vmem:[%s217 + $0xd] sm:$0x1] %vm280, %v706
        %v711 = vld [vmem:[%s169 + $0x4] sm:$0xf]
        %v712 = vld [vmem:[%s169 + $0x14] sm:$0xf]
        %v713 = vld [vmem:[%s169 + $0x24] sm:$0xf]
        %v714 = vld [vmem:[%s169 + $0x34] sm:$0xf]
        %v715 = vsel %vm518, %v711, -inf
        %716 = vmax.xlane.f32.xlu0 %v715
        %v717 = vpop.xlane.xlu0 %716
        %v718 = vsel %vm518, %v712, -inf
        %719 = vmax.xlane.f32.xlu0 %v718
        %v720 = vpop.xlane.xlu0 %719
        %v721 = vsel %vm518, %v713, -inf
        %722 = vmax.xlane.f32.xlu0 %v721
        %v723 = vpop.xlane.xlu0 %722
        %v724 = vsel %vm518, %v714, -inf
        %725 = vmax.xlane.f32.xlu0 %v724
        %v726 = vpop.xlane.xlu0 %725
        %v727 = vsel %vm481, %v717, -inf
        %v728 = vrot.slane %v727, 4
        %v729 = vmax.f32 %v727, %v728
        %v730 = vrot.slane %v729, 2
        %v731 = vmax.f32 %v729, %v730
        %v732 = vrot.slane %v731, 1
        %v733 = vmax.f32 %v731, %v732
        %v734 = vsel %vm481, %v720, -inf
        %v735 = vrot.slane %v734, 4
        %v736 = vmax.f32 %v734, %v735
        %v737 = vrot.slane %v736, 2
        %v738 = vmax.f32 %v736, %v737
        %v739 = vrot.slane %v738, 1
        %v740 = vmax.f32 %v738, %v739
        %v741 = vsel %vm481, %v723, -inf
        %v742 = vrot.slane %v741, 4
        %v743 = vmax.f32 %v741, %v742
        %v744 = vrot.slane %v743, 2
        %v745 = vmax.f32 %v743, %v744
        %v746 = vrot.slane %v745, 1
        %v747 = vmax.f32 %v745, %v746
        %v748 = vsel %vm481, %v726, -inf
        %v749 = vrot.slane %v748, 4
        %v750 = vmax.f32 %v748, %v749
        %v751 = vrot.slane %v750, 2
        %v752 = vmax.f32 %v750, %v751
        %v753 = vrot.slane %v752, 1
        %v754 = vmax.f32 %v752, %v753
        %755 = vst.msk [vmem:[%s217 + $0x1] sm:$0x1] %vm371, %v733
        %756 = vst.msk [vmem:[%s217 + $0x5] sm:$0x1] %vm371, %v740
        %757 = vst.msk [vmem:[%s217 + $0x9] sm:$0x1] %vm371, %v747
        %758 = vst.msk [vmem:[%s217 + $0xd] sm:$0x1] %vm371, %v754
        %v759 = vld [vmem:[%s169 + $0x4] sm:$0xf]
        %v760 = vld [vmem:[%s169 + $0x14] sm:$0xf]
        %v761 = vld [vmem:[%s169 + $0x24] sm:$0xf]
        %v762 = vld [vmem:[%s169 + $0x34] sm:$0xf]
        %v763 = vsel %vm567, %v759, -inf
        %764 = vmax.xlane.f32.xlu0 %v763
        %v765 = vpop.xlane.xlu0 %764
        %v766 = vsel %vm567, %v760, -inf
        %767 = vmax.xlane.f32.xlu0 %v766
        %v768 = vpop.xlane.xlu0 %767
        %v769 = vsel %vm567, %v761, -inf
        %770 = vmax.xlane.f32.xlu0 %v769
        %v771 = vpop.xlane.xlu0 %770
        %v772 = vsel %vm567, %v762, -inf
        %773 = vmax.xlane.f32.xlu0 %v772
        %v774 = vpop.xlane.xlu0 %773
        %v775 = vsel %vm481, %v765, -inf
        %v776 = vrot.slane %v775, 4
        %v777 = vmax.f32 %v775, %v776
        %v778 = vrot.slane %v777, 2
        %v779 = vmax.f32 %v777, %v778
        %v780 = vrot.slane %v779, 1
        %v781 = vmax.f32 %v779, %v780
        %v782 = vsel %vm481, %v768, -inf
        %v783 = vrot.slane %v782, 4
        %v784 = vmax.f32 %v782, %v783
        %v785 = vrot.slane %v784, 2
        %v786 = vmax.f32 %v784, %v785
        %v787 = vrot.slane %v786, 1
        %v788 = vmax.f32 %v786, %v787
        %v789 = vsel %vm481, %v771, -inf
        %v790 = vrot.slane %v789, 4
        %v791 = vmax.f32 %v789, %v790
        %v792 = vrot.slane %v791, 2
        %v793 = vmax.f32 %v791, %v792
        %v794 = vrot.slane %v793, 1
        %v795 = vmax.f32 %v793, %v794
        %v796 = vsel %vm481, %v774, -inf
        %v797 = vrot.slane %v796, 4
        %v798 = vmax.f32 %v796, %v797
        %v799 = vrot.slane %v798, 2
        %v800 = vmax.f32 %v798, %v799
        %v801 = vrot.slane %v800, 1
        %v802 = vmax.f32 %v800, %v801
        %803 = vst.msk [vmem:[%s217 + $0x1] sm:$0x1] %vm608, %v781
        %804 = vst.msk [vmem:[%s217 + $0x5] sm:$0x1] %vm608, %v788
        %805 = vst.msk [vmem:[%s217 + $0x9] sm:$0x1] %vm608, %v795
        %806 = vst.msk [vmem:[%s217 + $0xd] sm:$0x1] %vm608, %v802
        %v807 = vld [vmem:[%s169 + $0x4] sm:$0xf]
        %v808 = vld [vmem:[%s169 + $0x14] sm:$0xf]
        %v809 = vld [vmem:[%s169 + $0x24] sm:$0xf]
        %v810 = vld [vmem:[%s169 + $0x34] sm:$0xf]
        %v811 = vsel %vm617, %v807, -inf
        %812 = vmax.xlane.f32.xlu0 %v811
        %v813 = vpop.xlane.xlu0 %812
        %v814 = vsel %vm617, %v808, -inf
        %815 = vmax.xlane.f32.xlu0 %v814
        %v816 = vpop.xlane.xlu0 %815
        %v817 = vsel %vm617, %v809, -inf
        %818 = vmax.xlane.f32.xlu0 %v817
        %v819 = vpop.xlane.xlu0 %818
        %v820 = vsel %vm617, %v810, -inf
        %821 = vmax.xlane.f32.xlu0 %v820
        %v822 = vpop.xlane.xlu0 %821
        %v823 = vsel %vm481, %v813, -inf
        %v824 = vrot.slane %v823, 4
        %v825 = vmax.f32 %v823, %v824
        %v826 = vrot.slane %v825, 2
        %v827 = vmax.f32 %v825, %v826
        %v828 = vrot.slane %v827, 1
        %v829 = vmax.f32 %v827, %v828
        %v830 = vsel %vm481, %v816, -inf
        %v831 = vrot.slane %v830, 4
        %v832 = vmax.f32 %v830, %v831
        %v833 = vrot.slane %v832, 2
        %v834 = vmax.f32 %v832, %v833
        %v835 = vrot.slane %v834, 1
        %v836 = vmax.f32 %v834, %v835
        %v837 = vsel %vm481, %v819, -inf
        %v838 = vrot.slane %v837, 4
        %v839 = vmax.f32 %v837, %v838
        %v840 = vrot.slane %v839, 2
        %v841 = vmax.f32 %v839, %v840
        %v842 = vrot.slane %v841, 1
        %v843 = vmax.f32 %v841, %v842
        %v844 = vsel %vm481, %v822, -inf
        %v845 = vrot.slane %v844, 4
        %v846 = vmax.f32 %v844, %v845
        %v847 = vrot.slane %v846, 2
        %v848 = vmax.f32 %v846, %v847
        %v849 = vrot.slane %v848, 1
        %v850 = vmax.f32 %v848, %v849
        %851 = vst.msk [vmem:[%s217 + $0x1] sm:$0x1] %vm658, %v829
        %852 = vst.msk [vmem:[%s217 + $0x5] sm:$0x1] %vm658, %v836
        %853 = vst.msk [vmem:[%s217 + $0x9] sm:$0x1] %vm658, %v843
        %854 = vst.msk [vmem:[%s217 + $0xd] sm:$0x1] %vm658, %v850
        %v855 = vld [vmem:[%s169 + $0x8] sm:$0xf]
        %v856 = vld [vmem:[%s169 + $0x18] sm:$0xf]
        %v857 = vld [vmem:[%s169 + $0x28] sm:$0xf]
        %v858 = vld [vmem:[%s169 + $0x38] sm:$0xf]
        %v859 = vsel %vm468, %v855, -inf
        %860 = vmax.xlane.f32.xlu0 %v859
        %v861 = vpop.xlane.xlu0 %860
        %v862 = vsel %vm468, %v856, -inf
        %863 = vmax.xlane.f32.xlu0 %v862
        %v864 = vpop.xlane.xlu0 %863
        %v865 = vsel %vm468, %v857, -inf
        %866 = vmax.xlane.f32.xlu0 %v865
        %v867 = vpop.xlane.xlu0 %866
        %v868 = vsel %vm468, %v858, -inf
        %869 = vmax.xlane.f32.xlu0 %v868
        %v870 = vpop.xlane.xlu0 %869
        %v871 = vsel %vm481, %v861, -inf
        %v872 = vrot.slane %v871, 4
        %v873 = vmax.f32 %v871, %v872
        %v874 = vrot.slane %v873, 2
        %v875 = vmax.f32 %v873, %v874
        %v876 = vrot.slane %v875, 1
        %v877 = vmax.f32 %v875, %v876
        %v878 = vsel %vm481, %v864, -inf
        %v879 = vrot.slane %v878, 4
        %v880 = vmax.f32 %v878, %v879
        %v881 = vrot.slane %v880, 2
        %v882 = vmax.f32 %v880, %v881
        %v883 = vrot.slane %v882, 1
        %v884 = vmax.f32 %v882, %v883
        %v885 = vsel %vm481, %v867, -inf
        %v886 = vrot.slane %v885, 4
        %v887 = vmax.f32 %v885, %v886
        %v888 = vrot.slane %v887, 2
        %v889 = vmax.f32 %v887, %v888
        %v890 = vrot.slane %v889, 1
        %v891 = vmax.f32 %v889, %v890
        %v892 = vsel %vm481, %v870, -inf
        %v893 = vrot.slane %v892, 4
        %v894 = vmax.f32 %v892, %v893
        %v895 = vrot.slane %v894, 2
        %v896 = vmax.f32 %v894, %v895
        %v897 = vrot.slane %v896, 1
        %v898 = vmax.f32 %v896, %v897
        %899 = vst.msk [vmem:[%s217 + $0x2] sm:$0x1] %vm280, %v877
        %900 = vst.msk [vmem:[%s217 + $0x6] sm:$0x1] %vm280, %v884
        %901 = vst.msk [vmem:[%s217 + $0xa] sm:$0x1] %vm280, %v891
        %902 = vst.msk [vmem:[%s217 + $0xe] sm:$0x1] %vm280, %v898
        %v903 = vld [vmem:[%s169 + $0x8] sm:$0xf]
        %v904 = vld [vmem:[%s169 + $0x18] sm:$0xf]
        %v905 = vld [vmem:[%s169 + $0x28] sm:$0xf]
        %v906 = vld [vmem:[%s169 + $0x38] sm:$0xf]
        %v907 = vsel %vm518, %v903, -inf
        %908 = vmax.xlane.f32.xlu0 %v907
        %v909 = vpop.xlane.xlu0 %908
        %v910 = vsel %vm518, %v904, -inf
        %911 = vmax.xlane.f32.xlu0 %v910
        %v912 = vpop.xlane.xlu0 %911
        %v913 = vsel %vm518, %v905, -inf
        %914 = vmax.xlane.f32.xlu0 %v913
        %v915 = vpop.xlane.xlu0 %914
        %v916 = vsel %vm518, %v906, -inf
        %917 = vmax.xlane.f32.xlu0 %v916
        %v918 = vpop.xlane.xlu0 %917
        %v919 = vsel %vm481, %v909, -inf
        %v920 = vrot.slane %v919, 4
        %v921 = vmax.f32 %v919, %v920
        %v922 = vrot.slane %v921, 2
        %v923 = vmax.f32 %v921, %v922
        %v924 = vrot.slane %v923, 1
        %v925 = vmax.f32 %v923, %v924
        %v926 = vsel %vm481, %v912, -inf
        %v927 = vrot.slane %v926, 4
        %v928 = vmax.f32 %v926, %v927
        %v929 = vrot.slane %v928, 2
        %v930 = vmax.f32 %v928, %v929
        %v931 = vrot.slane %v930, 1
        %v932 = vmax.f32 %v930, %v931
        %v933 = vsel %vm481, %v915, -inf
        %v934 = vrot.slane %v933, 4
        %v935 = vmax.f32 %v933, %v934
        %v936 = vrot.slane %v935, 2
        %v937 = vmax.f32 %v935, %v936
        %v938 = vrot.slane %v937, 1
        %v939 = vmax.f32 %v937, %v938
        %v940 = vsel %vm481, %v918, -inf
        %v941 = vrot.slane %v940, 4
        %v942 = vmax.f32 %v940, %v941
        %v943 = vrot.slane %v942, 2
        %v944 = vmax.f32 %v942, %v943
        %v945 = vrot.slane %v944, 1
        %v946 = vmax.f32 %v944, %v945
        %947 = vst.msk [vmem:[%s217 + $0x2] sm:$0x1] %vm371, %v925
        %948 = vst.msk [vmem:[%s217 + $0x6] sm:$0x1] %vm371, %v932
        %949 = vst.msk [vmem:[%s217 + $0xa] sm:$0x1] %vm371, %v939
        %950 = vst.msk [vmem:[%s217 + $0xe] sm:$0x1] %vm371, %v946
        %v951 = vld [vmem:[%s169 + $0x8] sm:$0xf]
        %v952 = vld [vmem:[%s169 + $0x18] sm:$0xf]
        %v953 = vld [vmem:[%s169 + $0x28] sm:$0xf]
        %v954 = vld [vmem:[%s169 + $0x38] sm:$0xf]
        %v955 = vsel %vm567, %v951, -inf
        %956 = vmax.xlane.f32.xlu0 %v955
        %v957 = vpop.xlane.xlu0 %956
        %v958 = vsel %vm567, %v952, -inf
        %959 = vmax.xlane.f32.xlu0 %v958
        %v960 = vpop.xlane.xlu0 %959
        %v961 = vsel %vm567, %v953, -inf
        %962 = vmax.xlane.f32.xlu0 %v961
        %v963 = vpop.xlane.xlu0 %962
        %v964 = vsel %vm567, %v954, -inf
        %965 = vmax.xlane.f32.xlu0 %v964
        %v966 = vpop.xlane.xlu0 %965
        %v967 = vsel %vm481, %v957, -inf
        %v968 = vrot.slane %v967, 4
        %v969 = vmax.f32 %v967, %v968
        %v970 = vrot.slane %v969, 2
        %v971 = vmax.f32 %v969, %v970
        %v972 = vrot.slane %v971, 1
        %v973 = vmax.f32 %v971, %v972
        %v974 = vsel %vm481, %v960, -inf
        %v975 = vrot.slane %v974, 4
        %v976 = vmax.f32 %v974, %v975
        %v977 = vrot.slane %v976, 2
        %v978 = vmax.f32 %v976, %v977
        %v979 = vrot.slane %v978, 1
        %v980 = vmax.f32 %v978, %v979
        %v981 = vsel %vm481, %v963, -inf
        %v982 = vrot.slane %v981, 4
        %v983 = vmax.f32 %v981, %v982
        %v984 = vrot.slane %v983, 2
        %v985 = vmax.f32 %v983, %v984
        %v986 = vrot.slane %v985, 1
        %v987 = vmax.f32 %v985, %v986
        %v988 = vsel %vm481, %v966, -inf
        %v989 = vrot.slane %v988, 4
        %v990 = vmax.f32 %v988, %v989
        %v991 = vrot.slane %v990, 2
        %v992 = vmax.f32 %v990, %v991
        %v993 = vrot.slane %v992, 1
        %v994 = vmax.f32 %v992, %v993
        %995 = vst.msk [vmem:[%s217 + $0x2] sm:$0x1] %vm608, %v973
        %996 = vst.msk [vmem:[%s217 + $0x6] sm:$0x1] %vm608, %v980
        %997 = vst.msk [vmem:[%s217 + $0xa] sm:$0x1] %vm608, %v987
        %998 = vst.msk [vmem:[%s217 + $0xe] sm:$0x1] %vm608, %v994
        %v999 = vld [vmem:[%s169 + $0x8] sm:$0xf]
        %v1000 = vld [vmem:[%s169 + $0x18] sm:$0xf]
        %v1001 = vld [vmem:[%s169 + $0x28] sm:$0xf]
        %v1002 = vld [vmem:[%s169 + $0x38] sm:$0xf]
        %v1003 = vsel %vm617, %v999, -inf
        %1004 = vmax.xlane.f32.xlu0 %v1003
        %v1005 = vpop.xlane.xlu0 %1004
        %v1006 = vsel %vm617, %v1000, -inf
        %1007 = vmax.xlane.f32.xlu0 %v1006
        %v1008 = vpop.xlane.xlu0 %1007
        %v1009 = vsel %vm617, %v1001, -inf
        %1010 = vmax.xlane.f32.xlu0 %v1009
        %v1011 = vpop.xlane.xlu0 %1010
        %v1012 = vsel %vm617, %v1002, -inf
        %1013 = vmax.xlane.f32.xlu0 %v1012
        %v1014 = vpop.xlane.xlu0 %1013
        %v1015 = vsel %vm481, %v1005, -inf
        %v1016 = vrot.slane %v1015, 4
        %v1017 = vmax.f32 %v1015, %v1016
        %v1018 = vrot.slane %v1017, 2
        %v1019 = vmax.f32 %v1017, %v1018
        %v1020 = vrot.slane %v1019, 1
        %v1021 = vmax.f32 %v1019, %v1020
        %v1022 = vsel %vm481, %v1008, -inf
        %v1023 = vrot.slane %v1022, 4
        %v1024 = vmax.f32 %v1022, %v1023
        %v1025 = vrot.slane %v1024, 2
        %v1026 = vmax.f32 %v1024, %v1025
        %v1027 = vrot.slane %v1026, 1
        %v1028 = vmax.f32 %v1026, %v1027
        %v1029 = vsel %vm481, %v1011, -inf
        %v1030 = vrot.slane %v1029, 4
        %v1031 = vmax.f32 %v1029, %v1030
        %v1032 = vrot.slane %v1031, 2
        %v1033 = vmax.f32 %v1031, %v1032
        %v1034 = vrot.slane %v1033, 1
        %v1035 = vmax.f32 %v1033, %v1034
        %v1036 = vsel %vm481, %v1014, -inf
        %v1037 = vrot.slane %v1036, 4
        %v1038 = vmax.f32 %v1036, %v1037
        %v1039 = vrot.slane %v1038, 2
        %v1040 = vmax.f32 %v1038, %v1039
        %v1041 = vrot.slane %v1040, 1
        %v1042 = vmax.f32 %v1040, %v1041
        %1043 = vst.msk [vmem:[%s217 + $0x2] sm:$0x1] %vm658, %v1021
        %1044 = vst.msk [vmem:[%s217 + $0x6] sm:$0x1] %vm658, %v1028
        %1045 = vst.msk [vmem:[%s217 + $0xa] sm:$0x1] %vm658, %v1035
        %1046 = vst.msk [vmem:[%s217 + $0xe] sm:$0x1] %vm658, %v1042
        %v1047 = vld [vmem:[%s169 + $0xc] sm:$0xf]
        %v1048 = vld [vmem:[%s169 + $0x1c] sm:$0xf]
        %v1049 = vld [vmem:[%s169 + $0x2c] sm:$0xf]
        %v1050 = vld [vmem:[%s169 + $0x3c] sm:$0xf]
        %v1051 = vsel %vm468, %v1047, -inf
        %1052 = vmax.xlane.f32.xlu0 %v1051
        %v1053 = vpop.xlane.xlu0 %1052
        %v1054 = vsel %vm468, %v1048, -inf
        %1055 = vmax.xlane.f32.xlu0 %v1054
        %v1056 = vpop.xlane.xlu0 %1055
        %v1057 = vsel %vm468, %v1049, -inf
        %1058 = vmax.xlane.f32.xlu0 %v1057
        %v1059 = vpop.xlane.xlu0 %1058
        %v1060 = vsel %vm468, %v1050, -inf
        %1061 = vmax.xlane.f32.xlu0 %v1060
        %v1062 = vpop.xlane.xlu0 %1061
        %v1063 = vsel %vm481, %v1053, -inf
        %v1064 = vrot.slane %v1063, 4
        %v1065 = vmax.f32 %v1063, %v1064
        %v1066 = vrot.slane %v1065, 2
        %v1067 = vmax.f32 %v1065, %v1066
        %v1068 = vrot.slane %v1067, 1
        %v1069 = vmax.f32 %v1067, %v1068
        %v1070 = vsel %vm481, %v1056, -inf
        %v1071 = vrot.slane %v1070, 4
        %v1072 = vmax.f32 %v1070, %v1071
        %v1073 = vrot.slane %v1072, 2
        %v1074 = vmax.f32 %v1072, %v1073
        %v1075 = vrot.slane %v1074, 1
        %v1076 = vmax.f32 %v1074, %v1075
        %v1077 = vsel %vm481, %v1059, -inf
        %v1078 = vrot.slane %v1077, 4
        %v1079 = vmax.f32 %v1077, %v1078
        %v1080 = vrot.slane %v1079, 2
        %v1081 = vmax.f32 %v1079, %v1080
        %v1082 = vrot.slane %v1081, 1
        %v1083 = vmax.f32 %v1081, %v1082
        %v1084 = vsel %vm481, %v1062, -inf
        %v1085 = vrot.slane %v1084, 4
        %v1086 = vmax.f32 %v1084, %v1085
        %v1087 = vrot.slane %v1086, 2
        %v1088 = vmax.f32 %v1086, %v1087
        %v1089 = vrot.slane %v1088, 1
        %v1090 = vmax.f32 %v1088, %v1089
        %1091 = vst.msk [vmem:[%s217 + $0x3] sm:$0x1] %vm280, %v1069
        %1092 = vst.msk [vmem:[%s217 + $0x7] sm:$0x1] %vm280, %v1076
        %1093 = vst.msk [vmem:[%s217 + $0xb] sm:$0x1] %vm280, %v1083
        %1094 = vst.msk [vmem:[%s217 + $0xf] sm:$0x1] %vm280, %v1090
        %v1095 = vld [vmem:[%s169 + $0xc] sm:$0xf]
        %v1096 = vld [vmem:[%s169 + $0x1c] sm:$0xf]
        %v1097 = vld [vmem:[%s169 + $0x2c] sm:$0xf]
        %v1098 = vld [vmem:[%s169 + $0x3c] sm:$0xf]
        %v1099 = vsel %vm518, %v1095, -inf
        %1100 = vmax.xlane.f32.xlu0 %v1099
        %v1101 = vpop.xlane.xlu0 %1100
        %v1102 = vsel %vm518, %v1096, -inf
        %1103 = vmax.xlane.f32.xlu0 %v1102
        %v1104 = vpop.xlane.xlu0 %1103
        %v1105 = vsel %vm518, %v1097, -inf
        %1106 = vmax.xlane.f32.xlu0 %v1105
        %v1107 = vpop.xlane.xlu0 %1106
        %v1108 = vsel %vm518, %v1098, -inf
        %1109 = vmax.xlane.f32.xlu0 %v1108
        %v1110 = vpop.xlane.xlu0 %1109
        %v1111 = vsel %vm481, %v1101, -inf
        %v1112 = vrot.slane %v1111, 4
        %v1113 = vmax.f32 %v1111, %v1112
        %v1114 = vrot.slane %v1113, 2
        %v1115 = vmax.f32 %v1113, %v1114
        %v1116 = vrot.slane %v1115, 1
        %v1117 = vmax.f32 %v1115, %v1116
        %v1118 = vsel %vm481, %v1104, -inf
        %v1119 = vrot.slane %v1118, 4
        %v1120 = vmax.f32 %v1118, %v1119
        %v1121 = vrot.slane %v1120, 2
        %v1122 = vmax.f32 %v1120, %v1121
        %v1123 = vrot.slane %v1122, 1
        %v1124 = vmax.f32 %v1122, %v1123
        %v1125 = vsel %vm481, %v1107, -inf
        %v1126 = vrot.slane %v1125, 4
        %v1127 = vmax.f32 %v1125, %v1126
        %v1128 = vrot.slane %v1127, 2
        %v1129 = vmax.f32 %v1127, %v1128
        %v1130 = vrot.slane %v1129, 1
        %v1131 = vmax.f32 %v1129, %v1130
        %v1132 = vsel %vm481, %v1110, -inf
        %v1133 = vrot.slane %v1132, 4
        %v1134 = vmax.f32 %v1132, %v1133
        %v1135 = vrot.slane %v1134, 2
        %v1136 = vmax.f32 %v1134, %v1135
        %v1137 = vrot.slane %v1136, 1
        %v1138 = vmax.f32 %v1136, %v1137
        %1139 = vst.msk [vmem:[%s217 + $0x3] sm:$0x1] %vm371, %v1117
        %1140 = vst.msk [vmem:[%s217 + $0x7] sm:$0x1] %vm371, %v1124
        %1141 = vst.msk [vmem:[%s217 + $0xb] sm:$0x1] %vm371, %v1131
        %1142 = vst.msk [vmem:[%s217 + $0xf] sm:$0x1] %vm371, %v1138
        %v1143 = vld [vmem:[%s169 + $0xc] sm:$0xf]
        %v1144 = vld [vmem:[%s169 + $0x1c] sm:$0xf]
        %v1145 = vld [vmem:[%s169 + $0x2c] sm:$0xf]
        %v1146 = vld [vmem:[%s169 + $0x3c] sm:$0xf]
        %v1147 = vsel %vm567, %v1143, -inf
        %1148 = vmax.xlane.f32.xlu0 %v1147
        %v1149 = vpop.xlane.xlu0 %1148
        %v1150 = vsel %vm567, %v1144, -inf
        %1151 = vmax.xlane.f32.xlu0 %v1150
        %v1152 = vpop.xlane.xlu0 %1151
        %v1153 = vsel %vm567, %v1145, -inf
        %1154 = vmax.xlane.f32.xlu0 %v1153
        %v1155 = vpop.xlane.xlu0 %1154
        %v1156 = vsel %vm567, %v1146, -inf
        %1157 = vmax.xlane.f32.xlu0 %v1156
        %v1158 = vpop.xlane.xlu0 %1157
        %v1159 = vsel %vm481, %v1149, -inf
        %v1160 = vrot.slane %v1159, 4
        %v1161 = vmax.f32 %v1159, %v1160
        %v1162 = vrot.slane %v1161, 2
        %v1163 = vmax.f32 %v1161, %v1162
        %v1164 = vrot.slane %v1163, 1
        %v1165 = vmax.f32 %v1163, %v1164
        %v1166 = vsel %vm481, %v1152, -inf
        %v1167 = vrot.slane %v1166, 4
        %v1168 = vmax.f32 %v1166, %v1167
        %v1169 = vrot.slane %v1168, 2
        %v1170 = vmax.f32 %v1168, %v1169
        %v1171 = vrot.slane %v1170, 1
        %v1172 = vmax.f32 %v1170, %v1171
        %v1173 = vsel %vm481, %v1155, -inf
        %v1174 = vrot.slane %v1173, 4
        %v1175 = vmax.f32 %v1173, %v1174
        %v1176 = vrot.slane %v1175, 2
        %v1177 = vmax.f32 %v1175, %v1176
        %v1178 = vrot.slane %v1177, 1
        %v1179 = vmax.f32 %v1177, %v1178
        %v1180 = vsel %vm481, %v1158, -inf
        %v1181 = vrot.slane %v1180, 4
        %v1182 = vmax.f32 %v1180, %v1181
        %v1183 = vrot.slane %v1182, 2
        %v1184 = vmax.f32 %v1182, %v1183
        %v1185 = vrot.slane %v1184, 1
        %v1186 = vmax.f32 %v1184, %v1185
        %1187 = vst.msk [vmem:[%s217 + $0x3] sm:$0x1] %vm608, %v1165
        %1188 = vst.msk [vmem:[%s217 + $0x7] sm:$0x1] %vm608, %v1172
        %1189 = vst.msk [vmem:[%s217 + $0xb] sm:$0x1] %vm608, %v1179
        %1190 = vst.msk [vmem:[%s217 + $0xf] sm:$0x1] %vm608, %v1186
        %v1191 = vld [vmem:[%s169 + $0xc] sm:$0xf]
        %v1192 = vld [vmem:[%s169 + $0x1c] sm:$0xf]
        %v1193 = vld [vmem:[%s169 + $0x2c] sm:$0xf]
        %v1194 = vld [vmem:[%s169 + $0x3c] sm:$0xf]
        %v1195 = vsel %vm617, %v1191, -inf
        %1196 = vmax.xlane.f32.xlu0 %v1195
        %v1197 = vpop.xlane.xlu0 %1196
        %v1198 = vsel %vm617, %v1192, -inf
        %1199 = vmax.xlane.f32.xlu0 %v1198
        %v1200 = vpop.xlane.xlu0 %1199
        %v1201 = vsel %vm617, %v1193, -inf
        %1202 = vmax.xlane.f32.xlu0 %v1201
        %v1203 = vpop.xlane.xlu0 %1202
        %v1204 = vsel %vm617, %v1194, -inf
        %1205 = vmax.xlane.f32.xlu0 %v1204
        %v1206 = vpop.xlane.xlu0 %1205
        %v1207 = vsel %vm481, %v1197, -inf
        %v1208 = vrot.slane %v1207, 4
        %v1209 = vmax.f32 %v1207, %v1208
        %v1210 = vrot.slane %v1209, 2
        %v1211 = vmax.f32 %v1209, %v1210
        %v1212 = vrot.slane %v1211, 1
        %v1213 = vmax.f32 %v1211, %v1212
        %v1214 = vsel %vm481, %v1200, -inf
        %v1215 = vrot.slane %v1214, 4
        %v1216 = vmax.f32 %v1214, %v1215
        %v1217 = vrot.slane %v1216, 2
        %v1218 = vmax.f32 %v1216, %v1217
        %v1219 = vrot.slane %v1218, 1
        %v1220 = vmax.f32 %v1218, %v1219
        %v1221 = vsel %vm481, %v1203, -inf
        %v1222 = vrot.slane %v1221, 4
        %v1223 = vmax.f32 %v1221, %v1222
        %v1224 = vrot.slane %v1223, 2
        %v1225 = vmax.f32 %v1223, %v1224
        %v1226 = vrot.slane %v1225, 1
        %v1227 = vmax.f32 %v1225, %v1226
        %v1228 = vsel %vm481, %v1206, -inf
        %v1229 = vrot.slane %v1228, 4
        %v1230 = vmax.f32 %v1228, %v1229
        %v1231 = vrot.slane %v1230, 2
        %v1232 = vmax.f32 %v1230, %v1231
        %v1233 = vrot.slane %v1232, 1
        %v1234 = vmax.f32 %v1232, %v1233
        %1235 = vst.msk [vmem:[%s217 + $0x3] sm:$0x1] %vm658, %v1213
        %1236 = vst.msk [vmem:[%s217 + $0x7] sm:$0x1] %vm658, %v1220
        %1237 = vst.msk [vmem:[%s217 + $0xb] sm:$0x1] %vm658, %v1227
        %1238 = vst.msk [vmem:[%s217 + $0xf] sm:$0x1] %vm658, %v1234
        %s1239 = smul.u32 4, %s18
        %p1240 = scmp.lt.s32.totalorder %s1239, 7
        %s1241 = scalar_select %p1240, %s1239, 7
        %s1242 = scalar_lea.vmem %s1, %s1241
        %s1243 = smul.u32 4, %s18
        %p1244 = scmp.lt.s32.totalorder %s1243, 7
        %s1245 = scalar_select %p1244, %s1243, 7
        %s1246 = smul.addr %s1245, 2
        %s1247 = scalar_lea.vmem %s2, %s1246
        %s1248 = smul.u32 4, %s18
        %p1249 = scmp.lt.s32.totalorder %s1248, 7
        %s1250 = scalar_select %p1249, %s1248, 7
        %s1251 = smul.addr %s1250, 4
        %s1252 = scalar_lea.vmem %s3, %s1251
        // Predicated region
        $region29: #{tpu_custom_call.1} parent=23 // pred_check
          %p1253 = pneg %p62
        $region30: #{tpu_custom_call.1} parent=23 // pred_check_branch
          %1255 = sbr.rel (%p1253) target = $region32
        $region31: #{tpu_custom_call.1} parent=23 // pred_region
          %s1256 = smul.u32 4, %s18
        $region32: #{tpu_custom_call.1} parent=23 // pred_fallthru
          _
        // Predicated region
        $region33: #{tpu_custom_call.1} parent=23 // pred_check
          %p1257 = pneg %p88
        $region34: #{tpu_custom_call.1} parent=23 // pred_check_branch
          %1259 = sbr.rel (%p1257) target = $region36
        $region35: #{tpu_custom_call.1} parent=23 // pred_region
          %s1260 = smul.u32 4, %s18
        $region36: #{tpu_custom_call.1} parent=23 // pred_fallthru
          _
        // Predicated region
        $region37: #{tpu_custom_call.1} parent=23 // pred_check
          %p1261 = pneg %p114
        $region38: #{tpu_custom_call.1} parent=23 // pred_check_branch
          %1263 = sbr.rel (%p1261) target = $region40
        $region39: #{tpu_custom_call.1} parent=23 // pred_region
          %s1264 = smul.u32 4, %s18
        $region40: #{tpu_custom_call.1} parent=23 // pred_fallthru
          _
      $region24: #{tpu_custom_call.1} parent=5 // pred_fallthru
        _
      %p1265 = scmp.le.s32.totalorder 2, %s13
      // Predicated region
      $region41: #{tpu_custom_call.1} parent=5 // pred_check
        %p1266 = pneg %p1265
      $region42: #{tpu_custom_call.1} parent=5 // pred_check_branch
        %1268 = sbr.rel (%p1266) target = $region44
      $region43: #{tpu_custom_call.1} parent=5 // pred_region
        %s1269 = ssub.s32 %s13, 2
        // Predicated region
        $region45: #{tpu_custom_call.1} parent=43 // pred_check
          %p1270 = pneg %p68
        $region46: #{tpu_custom_call.1} parent=43 // pred_check_branch
          %1272 = sbr.rel (%p1270) target = $region48
        $region47: #{tpu_custom_call.1} parent=43 // pred_region
          %s1273 = smul.u32 4, %s19
          %p1274 = scmp.lt.s32.totalorder %s1273, 7
          %s1275 = scalar_select %p1274, %s1273, 7
          %s1276 = scalar_lea.vmem %s1, %s1275
        $region48: #{tpu_custom_call.1} parent=43 // pred_fallthru
          _
        // Predicated region
        $region49: #{tpu_custom_call.1} parent=43 // pred_check
          %p1277 = pneg %p94
        $region50: #{tpu_custom_call.1} parent=43 // pred_check_branch
          %1279 = sbr.rel (%p1277) target = $region52
        $region51: #{tpu_custom_call.1} parent=43 // pred_region
          %s1280 = smul.u32 4, %s19
          %p1281 = scmp.lt.s32.totalorder %s1280, 7
          %s1282 = scalar_select %p1281, %s1280, 7
          %s1283 = smul.addr %s1282, 2
          %s1284 = scalar_lea.vmem %s2, %s1283
        $region52: #{tpu_custom_call.1} parent=43 // pred_fallthru
          _
        // Predicated region
        $region53: #{tpu_custom_call.1} parent=43 // pred_check
          %p1285 = pneg %p120
        $region54: #{tpu_custom_call.1} parent=43 // pred_check_branch
          %1287 = sbr.rel (%p1285) target = $region56
        $region55: #{tpu_custom_call.1} parent=43 // pred_region
          %s1288 = smul.u32 4, %s19
          %p1289 = scmp.lt.s32.totalorder %s1288, 7
          %s1290 = scalar_select %p1289, %s1288, 7
          %s1291 = smul.addr %s1290, 4
          %s1292 = scalar_lea.vmem %s3, %s1291
        $region56: #{tpu_custom_call.1} parent=43 // pred_fallthru
          _
      $region44: #{tpu_custom_call.1} parent=5 // pred_fallthru
        _
    $region6: #{tpu_custom_call.1} parent=1 // loop_footer
      %s17 = sadd.s32 1, %s13
    $region7: #{tpu_custom_call.1} parent=1 // loop_footer_branch
      %12 = sbr.rel target = $region3
    $region8: #{tpu_custom_call.1} parent=1 // loop_exit
      _
    %1293 = vsyncpa [#allocation3], 1
    %s1294 = scalar_lea.sflag [#allocation3], 1
    %1295 = vsyncpa %s1294, 1

</llo_original>
